<compile_context>
chip_gen: v7x
topology: tpu7x:2x2x1
jax: 0.10.0
libtpu: 0.0.40
codegen_flags: <defaults>
</compile_context>

<pallas_src>
import math
import functools

import jax
import jax.numpy as jnp
from jax import lax
from jax.experimental import pallas as pl
from jax.experimental.pallas import tpu as pltpu


# --------------------------- fused single-step kernel -------------------------

def _csa_kernel(*refs, B, T, C, n_head, noise, has_bounds):
  hs = C // n_head
  scale = 1.0 / math.sqrt(hs)

  def sub_n(a):
    return a - noise if noise != 0.0 else a

  def add_n(a):
    return a + noise if noise != 0.0 else a

  if has_bounds:
    (x_ref, xlu_ref, wqkv_ref, bqkv_ref, wstk_ref,
     wproj_ref, bproj_ref, wpstk_ref, out_ref) = refs
  else:
    (x_ref, wqkv_ref, bqkv_ref, wproj_ref, bproj_ref, out_ref) = refs

  x = x_ref[...]            # (M, C), M = B*T
  wqkv = wqkv_ref[...]      # (C, 3C)  == W_attn.T
  bqkv = bqkv_ref[...]      # (1, 3C)
  wproj = wproj_ref[...]    # (C, C)   == W_proj.T
  bproj = bproj_ref[...]    # (1, C)

  # ---- c_attn center path: one matmul for the whole batch ----
  qkv = jnp.dot(x, wqkv, preferred_element_type=jnp.float32) + bqkv

  if has_bounds:
    xlu = xlu_ref[...]      # (M, 2C)  == [x_lower | x_upper]
    wstk = wstk_ref[...]    # (2C, 6C) == [[W+, W-], [W-, W+]] (of W_attn.T)
    qkv_b = jnp.dot(xlu, wstk, preferred_element_type=jnp.float32)
    qkv_l = sub_n(qkv_b[:, :3 * C] + bqkv)
    qkv_u = add_n(qkv_b[:, 3 * C:] + bqkv)

  # causal mask (== tril(block_size)[:T, :T])
  row = lax.broadcasted_iota(jnp.int32, (T, T), 0)
  col = lax.broadcasted_iota(jnp.int32, (T, T), 1)
  causal = col <= row
  neg_inf = jnp.float32(-jnp.inf)

  y_rows, yl_rows, yu_rows = [], [], []
  for b in range(B):                 # static unroll, B is small
    rb = slice(b * T, (b + 1) * T)
    y_heads, yl_heads, yu_heads = [], [], []
    for h in range(n_head):          # static unroll, n_head is small
      q_sl = slice(h * hs, (h + 1) * hs)
      k_sl = slice(C + h * hs, C + (h + 1) * hs)
      v_sl = slice(2 * C + h * hs, 2 * C + (h + 1) * hs)

      q = qkv[rb, q_sl]
      k = qkv[rb, k_sl]
      v = qkv[rb, v_sl]

      # ---- center attention (matches F.softmax numerics) ----
      att = lax.dot_general(q, k, (((1,), (1,)), ((), ())),
                            preferred_element_type=jnp.float32) * scale
      att = jnp.where(causal, att, neg_inf)
      att_m = jnp.max(att, axis=-1, keepdims=True)
      e = jnp.exp(att - att_m)
      sm = e * pl.reciprocal(jnp.sum(e, axis=-1, keepdims=True), approx=False)
      # TODO(synk): attn_dropout with p>0 (stochastic) not implemented; dropout=0 -> identity
      y_h = jnp.dot(sm, v, preferred_element_type=jnp.float32)
      y_heads.append(y_h)

      if has_bounds:
        ql = qkv_l[rb, q_sl]; qu = qkv_u[rb, q_sl]
        kl = qkv_l[rb, k_sl]; ku = qkv_u[rb, k_sl]
        vl = qkv_l[rb, v_sl]; vu = qkv_u[rb, v_sl]

        # interval bound of q @ k^T: running min/max over the 4 sign combos,
        # per-element clip BEFORE the sum (exactly as the reference does).
        qle = ql[:, None, :]; que = qu[:, None, :]       # (T, 1, hs)
        kle = kl[None, :, :]; kue = ku[None, :, :]       # (1, T, hs)
        p = qle * kle
        p_min = p
        p_max = p
        p = qle * kue
        p_min = jnp.minimum(p_min, p); p_max = jnp.maximum(p_max, p)
        p = que * kle
        p_min = jnp.minimum(p_min, p); p_max = jnp.maximum(p_max, p)
        p = que * kue
        p_min = jnp.minimum(p_min, p); p_max = jnp.maximum(p_max, p)
        p_min = jnp.clip(p_min, -1e9, 1e9)
        p_max = jnp.clip(p_max, -1e9, 1e9)
        att_l = sub_n(p_min.sum(axis=-1) * scale)
        att_u = add_n(p_max.sum(axis=-1) * scale)
        att_l = jnp.where(causal, att_l, neg_inf)
        att_u = jnp.where(causal, att_u, neg_inf)

        # interval softmax: softmax_lower = exp(att_l)/sum(exp(att_u)),
        # softmax_upper = exp(att_u)/sum(exp(att_l)).  Each ratio is invariant
        # to a shared per-row shift, so we shift for numerical safety:
        #   lower pair by rowmax(att_u)  -> denominator in [1, T], no overflow
        #   upper pair by rowmax(att_l)  -> denominator in [1, T], no 0/NaN
        # (exp(-inf)==0 at masked lanes reproduces the reference's is_neg_inf
        #  handling; att_l/att_u are never +inf after the +/-1e9 clip, so the
        #  reference's is_pos_inf branch is dead code.)
        c_u = jnp.max(att_u, axis=-1, keepdims=True)
        c_l = jnp.max(att_l, axis=-1, keepdims=True)
        den_u = jnp.sum(jnp.exp(att_u - c_u), axis=-1, keepdims=True)
        den_l = jnp.sum(jnp.exp(att_l - c_l), axis=-1, keepdims=True)
        sm_l = sub_n(jnp.exp(att_l - c_u) * pl.reciprocal(den_u, approx=False))
        sm_u = add_n(jnp.exp(att_u - c_l) * pl.reciprocal(den_l, approx=False))

        # att @ v interval: all 4 combos in ONE matmul:
        #   [sm_l; sm_u] (2T,T) @ [vl | vu] (T,2hs) -> 4 (T,hs) blocks
        smb = jnp.concatenate([sm_l, sm_u], axis=0)
        vb = jnp.concatenate([vl, vu], axis=1)
        prod = jnp.dot(smb, vb, preferred_element_type=jnp.float32)
        c_ll = prod[:T, :hs]; c_lu = prod[:T, hs:]
        c_ul = prod[T:, :hs]; c_uu = prod[T:, hs:]
        y_min = jnp.minimum(jnp.minimum(c_ll, c_lu), jnp.minimum(c_ul, c_uu))
        y_max = jnp.maximum(jnp.maximum(c_ll, c_lu), jnp.maximum(c_ul, c_uu))
        yl_heads.append(sub_n(y_min))
        yu_heads.append(add_n(y_max))

    y_rows.append(jnp.concatenate(y_heads, axis=1))        # (T, C)
    if has_bounds:
      yl_rows.append(jnp.concatenate(yl_heads, axis=1))
      yu_rows.append(jnp.concatenate(yu_heads, axis=1))

  # ---- single c_proj after the head merge ----
  y_merged = jnp.concatenate(y_rows, axis=0)                # (M, C)
  # TODO(synk): resid_dropout with p>0 (stochastic) not implemented; dropout=0 -> identity
  y_out = jnp.dot(y_merged, wproj, preferred_element_type=jnp.float32) + bproj

  if has_bounds:
    wpstk = wpstk_ref[...]                                  # (2C, 2C)
    ylu = jnp.concatenate([jnp.concatenate(yl_rows, axis=0),
                           jnp.concatenate(yu_rows, axis=0)], axis=1)  # (M, 2C)
    proj_b = jnp.dot(ylu, wpstk, preferred_element_type=jnp.float32)
    yl_out = sub_n(proj_b[:, :C] + bproj)
    yu_out = add_n(proj_b[:, C:] + bproj)
  else:
    yl_out = y_out
    yu_out = y_out

  # one lane-dense (M, 3C) store: [y | y_lower | y_upper]
  out_ref[...] = jnp.concatenate([y_out, yl_out, yu_out], axis=1)


# ------------------------------ full forward ---------------------------------

def causal_self_attention(x, params, n_head, x_error=None, operator_noise=0.0):
  W_attn, b_attn, W_proj, b_proj = params
  B, T, C = x.shape
  M = B * T
  operator_noise = float(operator_noise)
  has_bounds = (x_error is not None) or (operator_noise != 0.0)

  f32 = jnp.float32
  x2 = x.reshape(M, C).astype(f32)
  wqkv_t = W_attn.T.astype(f32)                   # (C, 3C)
  bqkv = b_attn.reshape(1, 3 * C).astype(f32)
  wproj_t = W_proj.T.astype(f32)                  # (C, C)
  bproj = b_proj.reshape(1, C).astype(f32)

  kernel = functools.partial(_csa_kernel, B=B, T=T, C=C, n_head=n_head,
                             noise=operator_noise, has_bounds=has_bounds)

  def full_spec(shape):
    return pl.BlockSpec(shape, lambda i: (0, 0))

  out_shape = jax.ShapeDtypeStruct((M, 3 * C), f32)
  out_spec = full_spec((M, 3 * C))

  if has_bounds:
    if x_error is None:
      x_lower = x2
      x_upper = x2
    else:
      xe = x_error.reshape(M, C).astype(f32)
      x_lower = x2 - xe
      x_upper = x2 + xe
    xlu = jnp.concatenate([x_lower, x_upper], axis=1)        # (M, 2C)

    # stacked clamped weights precomputed once in the wrapper
    w_pos = jnp.maximum(wqkv_t, 0.0)
    w_neg = jnp.minimum(wqkv_t, 0.0)
    wstk = jnp.concatenate([jnp.concatenate([w_pos, w_neg], axis=1),
                            jnp.concatenate([w_neg, w_pos], axis=1)], axis=0)   # (2C, 6C)
    wp_pos = jnp.maximum(wproj_t, 0.0)
    wp_neg = jnp.minimum(wproj_t, 0.0)
    wpstk = jnp.concatenate([jnp.concatenate([wp_pos, wp_neg], axis=1),
                             jnp.concatenate([wp_neg, wp_pos], axis=1)], axis=0)  # (2C, 2C)

    inputs = (x2, xlu, wqkv_t, bqkv, wstk, wproj_t, bproj, wpstk)
    in_specs = [full_spec((M, C)), full_spec((M, 2 * C)),
                full_spec((C, 3 * C)), full_spec((1, 3 * C)),
                full_spec((2 * C, 6 * C)),
                full_spec((C, C)), full_spec((1, C)),
                full_spec((2 * C, 2 * C))]
  else:
    inputs = (x2, wqkv_t, bqkv, wproj_t, bproj)
    in_specs = [full_spec((M, C)),
                full_spec((C, 3 * C)), full_spec((1, 3 * C)),
                full_spec((C, C)), full_spec((1, C))]

  out = pl.pallas_call(
      kernel,
      out_shape=out_shape,
      grid=(1,),
      in_specs=in_specs,
      out_specs=out_spec,
      compiler_params=pltpu.CompilerParams(
          dimension_semantics=("arbitrary",)),
  )(*inputs)

  y = out[:, :C].reshape(B, T, C)
  y_lower = out[:, C:2 * C].reshape(B, T, C)
  y_upper = out[:, 2 * C:].reshape(B, T, C)
  return y, y_lower, y_upper


# --------------------------------- driver ------------------------------------

if __name__ == "__main__":
  B, T, C, n_head = 2, 8, 32, 4   # block_size == T == 8, bias=True, dropout=0.0

  key = jax.random.PRNGKey(0)
  kx, kw1, kb1, kw2, kb2 = jax.random.split(key, 5)
  x = jax.random.normal(kx, (B, T, C), dtype=jnp.float32)
  W_attn = jax.random.normal(kw1, (3 * C, C), dtype=jnp.float32) * 0.02
  b_attn = jax.random.normal(kb1, (3 * C,), dtype=jnp.float32) * 0.02
  W_proj = jax.random.normal(kw2, (C, C), dtype=jnp.float32) * 0.02
  b_proj = jax.random.normal(kb2, (C,), dtype=jnp.float32) * 0.02
  params = (W_attn, b_attn, W_proj, b_proj)

  # 1) x_error=None, operator_noise=0 -> degenerate fast path, bounds == y
  fwd = jax.jit(functools.partial(causal_self_attention, n_head=n_head))
  y, y_lower, y_upper = fwd(x, params)
  jax.block_until_ready((y, y_lower, y_upper))

  assert y.shape == (B, T, C)
  assert y_lower.shape == (B, T, C) and y_upper.shape == (B, T, C)
  assert bool(jnp.all(jnp.isfinite(y)))
  assert bool(jnp.allclose(y, y_lower, atol=1e-3, rtol=1e-3))
  assert bool(jnp.allclose(y, y_upper, atol=1e-3, rtol=1e-3))

  # 2) non-degenerate interval path: x_error > 0, operator_noise > 0
  fwd_iv = jax.jit(functools.partial(causal_self_attention, n_head=n_head,
                                     operator_noise=0.01))
  x_err = jnp.full((B, T, C), 0.01, dtype=jnp.float32)
  y2, y2_lower, y2_upper = fwd_iv(x, params, x_error=x_err)
  jax.block_until_ready((y2, y2_lower, y2_upper))

  assert bool(jnp.all(jnp.isfinite(y2)))
  assert bool(jnp.all(jnp.isfinite(y2_lower)))
  assert bool(jnp.all(jnp.isfinite(y2_upper)))
  assert bool(jnp.allclose(y2, y, atol=1e-5, rtol=1e-5))   # center path unchanged
  assert bool(jnp.all(y2_lower <= y2_upper + 1e-6))        # bounds are ordered

  print("KERNEL_OK")
</pallas_src>

<mosaic_0001>
module attributes {stable_mosaic.version = 11 : i64} {
  func.func @_csa_kernel(%arg0: i32, %arg1: memref<16x32xf32, #tpu.memory_space<vmem>>, %arg2: memref<32x96xf32, #tpu.memory_space<vmem>>, %arg3: memref<1x96xf32, #tpu.memory_space<vmem>>, %arg4: memref<32x32xf32, #tpu.memory_space<vmem>>, %arg5: memref<1x32xf32, #tpu.memory_space<vmem>>, %arg6: memref<16x96xf32, #tpu.memory_space<vmem>>) attributes {dimension_semantics = [#tpu.dimension_semantics<arbitrary>], iteration_bounds = array<i64: 1>, scalar_prefetch = 0 : i64, scratch_operands = 0 : i64, tpu.core_type = #tpu.core_type<tc>, window_params = [{pipeline_mode = #tpu.pipeline_mode<synchronous>, transform_indices = @transform_0, window_bounds = array<i64: 16, 32>}, {pipeline_mode = #tpu.pipeline_mode<synchronous>, transform_indices = @transform_1, window_bounds = array<i64: 32, 96>}, {pipeline_mode = #tpu.pipeline_mode<synchronous>, transform_indices = @transform_2, window_bounds = array<i64: 1, 96>}, {pipeline_mode = #tpu.pipeline_mode<synchronous>, transform_indices = @transform_3, window_bounds = array<i64: 32, 32>}, {pipeline_mode = #tpu.pipeline_mode<synchronous>, transform_indices = @transform_4, window_bounds = array<i64: 1, 32>}, {pipeline_mode = #tpu.pipeline_mode<synchronous>, transform_indices = @transform_5, window_bounds = array<i64: 16, 96>}]} {
    %c0 = arith.constant 0 : index
    %c0_0 = arith.constant 0 : index
    %0 = vector.load %arg1[%c0, %c0_0] : memref<16x32xf32, #tpu.memory_space<vmem>>, vector<16x32xf32>
    %c0_1 = arith.constant 0 : index
    %c0_2 = arith.constant 0 : index
    %1 = vector.load %arg2[%c0_1, %c0_2] : memref<32x96xf32, #tpu.memory_space<vmem>>, vector<32x96xf32>
    %c0_3 = arith.constant 0 : index
    %c0_4 = arith.constant 0 : index
    %2 = vector.load %arg3[%c0_3, %c0_4] : memref<1x96xf32, #tpu.memory_space<vmem>>, vector<1x96xf32>
    %c0_5 = arith.constant 0 : index
    %c0_6 = arith.constant 0 : index
    %3 = vector.load %arg4[%c0_5, %c0_6] : memref<32x32xf32, #tpu.memory_space<vmem>>, vector<32x32xf32>
    %c0_7 = arith.constant 0 : index
    %c0_8 = arith.constant 0 : index
    %4 = vector.load %arg5[%c0_7, %c0_8] : memref<1x32xf32, #tpu.memory_space<vmem>>, vector<1x32xf32>
    %cst = arith.constant dense<0.000000e+00> : vector<16x96xf32>
    %5 = tpu.matmul %0, %1, %cst {dimension_numbers = #tpu.dot_dimension_numbers<[1], [0], [0], [1], [0, 0, 1, 1], [], []>} : vector<16x32xf32>, vector<32x96xf32>, vector<16x96xf32> -> vector<16x96xf32>
    %6 = vector.broadcast %2 : vector<1x96xf32> to vector<16x96xf32>
    %7 = arith.addf %5, %6 : vector<16x96xf32>
    %8 = tpu.iota {dimensions = array<i32: 0>} : vector<8x8xi32>
    %9 = tpu.iota {dimensions = array<i32: 1>} : vector<8x8xi32>
    %10 = arith.cmpi sle, %9, %8 : vector<8x8xi32>
    %11 = vector.extract_strided_slice %7 {offsets = [0, 0], sizes = [8, 8], strides = [1, 1]} : vector<16x96xf32> to vector<8x8xf32>
    %12 = vector.extract_strided_slice %7 {offsets = [0, 32], sizes = [8, 8], strides = [1, 1]} : vector<16x96xf32> to vector<8x8xf32>
    %13 = vector.extract_strided_slice %7 {offsets = [0, 64], sizes = [8, 8], strides = [1, 1]} : vector<16x96xf32> to vector<8x8xf32>
    %cst_9 = arith.constant dense<0.000000e+00> : vector<8x8xf32>
    %14 = tpu.matmul %11, %12, %cst_9 {dimension_numbers = #tpu.dot_dimension_numbers<[1], [1], [0], [0], [0, 0, 1, 0], [], []>} : vector<8x8xf32>, vector<8x8xf32>, vector<8x8xf32> -> vector<8x8xf32>
    %cst_10 = arith.constant 0.353553385 : f32
    %15 = vector.broadcast %cst_10 : f32 to vector<8x8xf32>
    %16 = arith.mulf %14, %15 : vector<8x8xf32>
    %cst_11 = arith.constant 0xFF800000 : f32
    %17 = vector.broadcast %cst_11 : f32 to vector<8x8xf32>
    %18 = arith.select %10, %16, %17 : vector<8x8xi1>, vector<8x8xf32>
    %cst_12 = arith.constant dense<0xFF800000> : vector<8xf32>
    %19 = vector.multi_reduction <maximumf>, %18, %cst_12 [1] : vector<8x8xf32> to vector<8xf32>
    %20 = vector.shape_cast %19 : vector<8xf32> to vector<8x1xf32>
    %21 = vector.broadcast %20 : vector<8x1xf32> to vector<8x8xf32>
    %22 = arith.subf %18, %21 : vector<8x8xf32>
    %23 = math.exp %22 : vector<8x8xf32>
    %cst_13 = arith.constant dense<0.000000e+00> : vector<8xf32>
    %24 = vector.multi_reduction <add>, %23, %cst_13 [1] : vector<8x8xf32> to vector<8xf32>
    %25 = vector.shape_cast %24 : vector<8xf32> to vector<8x1xf32>
    %26 = tpu.reciprocal %25 : vector<8x1xf32> -> vector<8x1xf32>
    %27 = vector.broadcast %26 : vector<8x1xf32> to vector<8x8xf32>
    %28 = arith.mulf %23, %27 : vector<8x8xf32>
    %cst_14 = arith.constant dense<0.000000e+00> : vector<8x8xf32>
    %29 = tpu.matmul %28, %13, %cst_14 {dimension_numbers = #tpu.dot_dimension_numbers<[1], [0], [0], [1], [0, 0, 1, 1], [], []>} : vector<8x8xf32>, vector<8x8xf32>, vector<8x8xf32> -> vector<8x8xf32>
    %30 = vector.extract_strided_slice %7 {offsets = [0, 8], sizes = [8, 8], strides = [1, 1]} : vector<16x96xf32> to vector<8x8xf32>
    %31 = vector.extract_strided_slice %7 {offsets = [0, 40], sizes = [8, 8], strides = [1, 1]} : vector<16x96xf32> to vector<8x8xf32>
    %32 = vector.extract_strided_slice %7 {offsets = [0, 72], sizes = [8, 8], strides = [1, 1]} : vector<16x96xf32> to vector<8x8xf32>
    %cst_15 = arith.constant dense<0.000000e+00> : vector<8x8xf32>
    %33 = tpu.matmul %30, %31, %cst_15 {dimension_numbers = #tpu.dot_dimension_numbers<[1], [1], [0], [0], [0, 0, 1, 0], [], []>} : vector<8x8xf32>, vector<8x8xf32>, vector<8x8xf32> -> vector<8x8xf32>
    %cst_16 = arith.constant 0.353553385 : f32
    %34 = vector.broadcast %cst_16 : f32 to vector<8x8xf32>
    %35 = arith.mulf %33, %34 : vector<8x8xf32>
    %cst_17 = arith.constant 0xFF800000 : f32
    %36 = vector.broadcast %cst_17 : f32 to vector<8x8xf32>
    %37 = arith.select %10, %35, %36 : vector<8x8xi1>, vector<8x8xf32>
    %cst_18 = arith.constant dense<0xFF800000> : vector<8xf32>
    %38 = vector.multi_reduction <maximumf>, %37, %cst_18 [1] : vector<8x8xf32> to vector<8xf32>
    %39 = vector.shape_cast %38 : vector<8xf32> to vector<8x1xf32>
    %40 = vector.broadcast %39 : vector<8x1xf32> to vector<8x8xf32>
    %41 = arith.subf %37, %40 : vector<8x8xf32>
    %42 = math.exp %41 : vector<8x8xf32>
    %cst_19 = arith.constant dense<0.000000e+00> : vector<8xf32>
    %43 = vector.multi_reduction <add>, %42, %cst_19 [1] : vector<8x8xf32> to vector<8xf32>
    %44 = vector.shape_cast %43 : vector<8xf32> to vector<8x1xf32>
    %45 = tpu.reciprocal %44 : vector<8x1xf32> -> vector<8x1xf32>
    %46 = vector.broadcast %45 : vector<8x1xf32> to vector<8x8xf32>
    %47 = arith.mulf %42, %46 : vector<8x8xf32>
    %cst_20 = arith.constant dense<0.000000e+00> : vector<8x8xf32>
    %48 = tpu.matmul %47, %32, %cst_20 {dimension_numbers = #tpu.dot_dimension_numbers<[1], [0], [0], [1], [0, 0, 1, 1], [], []>} : vector<8x8xf32>, vector<8x8xf32>, vector<8x8xf32> -> vector<8x8xf32>
    %49 = vector.extract_strided_slice %7 {offsets = [0, 16], sizes = [8, 8], strides = [1, 1]} : vector<16x96xf32> to vector<8x8xf32>
    %50 = vector.extract_strided_slice %7 {offsets = [0, 48], sizes = [8, 8], strides = [1, 1]} : vector<16x96xf32> to vector<8x8xf32>
    %51 = vector.extract_strided_slice %7 {offsets = [0, 80], sizes = [8, 8], strides = [1, 1]} : vector<16x96xf32> to vector<8x8xf32>
    %cst_21 = arith.constant dense<0.000000e+00> : vector<8x8xf32>
    %52 = tpu.matmul %49, %50, %cst_21 {dimension_numbers = #tpu.dot_dimension_numbers<[1], [1], [0], [0], [0, 0, 1, 0], [], []>} : vector<8x8xf32>, vector<8x8xf32>, vector<8x8xf32> -> vector<8x8xf32>
    %cst_22 = arith.constant 0.353553385 : f32
    %53 = vector.broadcast %cst_22 : f32 to vector<8x8xf32>
    %54 = arith.mulf %52, %53 : vector<8x8xf32>
    %cst_23 = arith.constant 0xFF800000 : f32
    %55 = vector.broadcast %cst_23 : f32 to vector<8x8xf32>
    %56 = arith.select %10, %54, %55 : vector<8x8xi1>, vector<8x8xf32>
    %cst_24 = arith.constant dense<0xFF800000> : vector<8xf32>
    %57 = vector.multi_reduction <maximumf>, %56, %cst_24 [1] : vector<8x8xf32> to vector<8xf32>
    %58 = vector.shape_cast %57 : vector<8xf32> to vector<8x1xf32>
    %59 = vector.broadcast %58 : vector<8x1xf32> to vector<8x8xf32>
    %60 = arith.subf %56, %59 : vector<8x8xf32>
    %61 = math.exp %60 : vector<8x8xf32>
    %cst_25 = arith.constant dense<0.000000e+00> : vector<8xf32>
    %62 = vector.multi_reduction <add>, %61, %cst_25 [1] : vector<8x8xf32> to vector<8xf32>
    %63 = vector.shape_cast %62 : vector<8xf32> to vector<8x1xf32>
    %64 = tpu.reciprocal %63 : vector<8x1xf32> -> vector<8x1xf32>
    %65 = vector.broadcast %64 : vector<8x1xf32> to vector<8x8xf32>
    %66 = arith.mulf %61, %65 : vector<8x8xf32>
    %cst_26 = arith.constant dense<0.000000e+00> : vector<8x8xf32>
    %67 = tpu.matmul %66, %51, %cst_26 {dimension_numbers = #tpu.dot_dimension_numbers<[1], [0], [0], [1], [0, 0, 1, 1], [], []>} : vector<8x8xf32>, vector<8x8xf32>, vector<8x8xf32> -> vector<8x8xf32>
    %68 = vector.extract_strided_slice %7 {offsets = [0, 24], sizes = [8, 8], strides = [1, 1]} : vector<16x96xf32> to vector<8x8xf32>
    %69 = vector.extract_strided_slice %7 {offsets = [0, 56], sizes = [8, 8], strides = [1, 1]} : vector<16x96xf32> to vector<8x8xf32>
    %70 = vector.extract_strided_slice %7 {offsets = [0, 88], sizes = [8, 8], strides = [1, 1]} : vector<16x96xf32> to vector<8x8xf32>
    %cst_27 = arith.constant dense<0.000000e+00> : vector<8x8xf32>
    %71 = tpu.matmul %68, %69, %cst_27 {dimension_numbers = #tpu.dot_dimension_numbers<[1], [1], [0], [0], [0, 0, 1, 0], [], []>} : vector<8x8xf32>, vector<8x8xf32>, vector<8x8xf32> -> vector<8x8xf32>
    %cst_28 = arith.constant 0.353553385 : f32
    %72 = vector.broadcast %cst_28 : f32 to vector<8x8xf32>
    %73 = arith.mulf %71, %72 : vector<8x8xf32>
    %cst_29 = arith.constant 0xFF800000 : f32
    %74 = vector.broadcast %cst_29 : f32 to vector<8x8xf32>
    %75 = arith.select %10, %73, %74 : vector<8x8xi1>, vector<8x8xf32>
    %cst_30 = arith.constant dense<0xFF800000> : vector<8xf32>
    %76 = vector.multi_reduction <maximumf>, %75, %cst_30 [1] : vector<8x8xf32> to vector<8xf32>
    %77 = vector.shape_cast %76 : vector<8xf32> to vector<8x1xf32>
    %78 = vector.broadcast %77 : vector<8x1xf32> to vector<8x8xf32>
    %79 = arith.subf %75, %78 : vector<8x8xf32>
    %80 = math.exp %79 : vector<8x8xf32>
    %cst_31 = arith.constant dense<0.000000e+00> : vector<8xf32>
    %81 = vector.multi_reduction <add>, %80, %cst_31 [1] : vector<8x8xf32> to vector<8xf32>
    %82 = vector.shape_cast %81 : vector<8xf32> to vector<8x1xf32>
    %83 = tpu.reciprocal %82 : vector<8x1xf32> -> vector<8x1xf32>
    %84 = vector.broadcast %83 : vector<8x1xf32> to vector<8x8xf32>
    %85 = arith.mulf %80, %84 : vector<8x8xf32>
    %cst_32 = arith.constant dense<0.000000e+00> : vector<8x8xf32>
    %86 = tpu.matmul %85, %70, %cst_32 {dimension_numbers = #tpu.dot_dimension_numbers<[1], [0], [0], [1], [0, 0, 1, 1], [], []>} : vector<8x8xf32>, vector<8x8xf32>, vector<8x8xf32> -> vector<8x8xf32>
    %87 = tpu.concatenate %29, %48, %67, %86 in 1 : vector<8x8xf32>, vector<8x8xf32>, vector<8x8xf32>, vector<8x8xf32> -> vector<8x32xf32>
    %88 = vector.extract_strided_slice %7 {offsets = [8, 0], sizes = [8, 8], strides = [1, 1]} : vector<16x96xf32> to vector<8x8xf32>
    %89 = vector.extract_strided_slice %7 {offsets = [8, 32], sizes = [8, 8], strides = [1, 1]} : vector<16x96xf32> to vector<8x8xf32>
    %90 = vector.extract_strided_slice %7 {offsets = [8, 64], sizes = [8, 8], strides = [1, 1]} : vector<16x96xf32> to vector<8x8xf32>
    %cst_33 = arith.constant dense<0.000000e+00> : vector<8x8xf32>
    %91 = tpu.matmul %88, %89, %cst_33 {dimension_numbers = #tpu.dot_dimension_numbers<[1], [1], [0], [0], [0, 0, 1, 0], [], []>} : vector<8x8xf32>, vector<8x8xf32>, vector<8x8xf32> -> vector<8x8xf32>
    %cst_34 = arith.constant 0.353553385 : f32
    %92 = vector.broadcast %cst_34 : f32 to vector<8x8xf32>
    %93 = arith.mulf %91, %92 : vector<8x8xf32>
    %cst_35 = arith.constant 0xFF800000 : f32
    %94 = vector.broadcast %cst_35 : f32 to vector<8x8xf32>
    %95 = arith.select %10, %93, %94 : vector<8x8xi1>, vector<8x8xf32>
    %cst_36 = arith.constant dense<0xFF800000> : vector<8xf32>
    %96 = vector.multi_reduction <maximumf>, %95, %cst_36 [1] : vector<8x8xf32> to vector<8xf32>
    %97 = vector.shape_cast %96 : vector<8xf32> to vector<8x1xf32>
    %98 = vector.broadcast %97 : vector<8x1xf32> to vector<8x8xf32>
    %99 = arith.subf %95, %98 : vector<8x8xf32>
    %100 = math.exp %99 : vector<8x8xf32>
    %cst_37 = arith.constant dense<0.000000e+00> : vector<8xf32>
    %101 = vector.multi_reduction <add>, %100, %cst_37 [1] : vector<8x8xf32> to vector<8xf32>
    %102 = vector.shape_cast %101 : vector<8xf32> to vector<8x1xf32>
    %103 = tpu.reciprocal %102 : vector<8x1xf32> -> vector<8x1xf32>
    %104 = vector.broadcast %103 : vector<8x1xf32> to vector<8x8xf32>
    %105 = arith.mulf %100, %104 : vector<8x8xf32>
    %cst_38 = arith.constant dense<0.000000e+00> : vector<8x8xf32>
    %106 = tpu.matmul %105, %90, %cst_38 {dimension_numbers = #tpu.dot_dimension_numbers<[1], [0], [0], [1], [0, 0, 1, 1], [], []>} : vector<8x8xf32>, vector<8x8xf32>, vector<8x8xf32> -> vector<8x8xf32>
    %107 = vector.extract_strided_slice %7 {offsets = [8, 8], sizes = [8, 8], strides = [1, 1]} : vector<16x96xf32> to vector<8x8xf32>
    %108 = vector.extract_strided_slice %7 {offsets = [8, 40], sizes = [8, 8], strides = [1, 1]} : vector<16x96xf32> to vector<8x8xf32>
    %109 = vector.extract_strided_slice %7 {offsets = [8, 72], sizes = [8, 8], strides = [1, 1]} : vector<16x96xf32> to vector<8x8xf32>
    %cst_39 = arith.constant dense<0.000000e+00> : vector<8x8xf32>
    %110 = tpu.matmul %107, %108, %cst_39 {dimension_numbers = #tpu.dot_dimension_numbers<[1], [1], [0], [0], [0, 0, 1, 0], [], []>} : vector<8x8xf32>, vector<8x8xf32>, vector<8x8xf32> -> vector<8x8xf32>
    %cst_40 = arith.constant 0.353553385 : f32
    %111 = vector.broadcast %cst_40 : f32 to vector<8x8xf32>
    %112 = arith.mulf %110, %111 : vector<8x8xf32>
    %cst_41 = arith.constant 0xFF800000 : f32
    %113 = vector.broadcast %cst_41 : f32 to vector<8x8xf32>
    %114 = arith.select %10, %112, %113 : vector<8x8xi1>, vector<8x8xf32>
    %cst_42 = arith.constant dense<0xFF800000> : vector<8xf32>
    %115 = vector.multi_reduction <maximumf>, %114, %cst_42 [1] : vector<8x8xf32> to vector<8xf32>
    %116 = vector.shape_cast %115 : vector<8xf32> to vector<8x1xf32>
    %117 = vector.broadcast %116 : vector<8x1xf32> to vector<8x8xf32>
    %118 = arith.subf %114, %117 : vector<8x8xf32>
    %119 = math.exp %118 : vector<8x8xf32>
    %cst_43 = arith.constant dense<0.000000e+00> : vector<8xf32>
    %120 = vector.multi_reduction <add>, %119, %cst_43 [1] : vector<8x8xf32> to vector<8xf32>
    %121 = vector.shape_cast %120 : vector<8xf32> to vector<8x1xf32>
    %122 = tpu.reciprocal %121 : vector<8x1xf32> -> vector<8x1xf32>
    %123 = vector.broadcast %122 : vector<8x1xf32> to vector<8x8xf32>
    %124 = arith.mulf %119, %123 : vector<8x8xf32>
    %cst_44 = arith.constant dense<0.000000e+00> : vector<8x8xf32>
    %125 = tpu.matmul %124, %109, %cst_44 {dimension_numbers = #tpu.dot_dimension_numbers<[1], [0], [0], [1], [0, 0, 1, 1], [], []>} : vector<8x8xf32>, vector<8x8xf32>, vector<8x8xf32> -> vector<8x8xf32>
    %126 = vector.extract_strided_slice %7 {offsets = [8, 16], sizes = [8, 8], strides = [1, 1]} : vector<16x96xf32> to vector<8x8xf32>
    %127 = vector.extract_strided_slice %7 {offsets = [8, 48], sizes = [8, 8], strides = [1, 1]} : vector<16x96xf32> to vector<8x8xf32>
    %128 = vector.extract_strided_slice %7 {offsets = [8, 80], sizes = [8, 8], strides = [1, 1]} : vector<16x96xf32> to vector<8x8xf32>
    %cst_45 = arith.constant dense<0.000000e+00> : vector<8x8xf32>
    %129 = tpu.matmul %126, %127, %cst_45 {dimension_numbers = #tpu.dot_dimension_numbers<[1], [1], [0], [0], [0, 0, 1, 0], [], []>} : vector<8x8xf32>, vector<8x8xf32>, vector<8x8xf32> -> vector<8x8xf32>
    %cst_46 = arith.constant 0.353553385 : f32
    %130 = vector.broadcast %cst_46 : f32 to vector<8x8xf32>
    %131 = arith.mulf %129, %130 : vector<8x8xf32>
    %cst_47 = arith.constant 0xFF800000 : f32
    %132 = vector.broadcast %cst_47 : f32 to vector<8x8xf32>
    %133 = arith.select %10, %131, %132 : vector<8x8xi1>, vector<8x8xf32>
    %cst_48 = arith.constant dense<0xFF800000> : vector<8xf32>
    %134 = vector.multi_reduction <maximumf>, %133, %cst_48 [1] : vector<8x8xf32> to vector<8xf32>
    %135 = vector.shape_cast %134 : vector<8xf32> to vector<8x1xf32>
    %136 = vector.broadcast %135 : vector<8x1xf32> to vector<8x8xf32>
    %137 = arith.subf %133, %136 : vector<8x8xf32>
    %138 = math.exp %137 : vector<8x8xf32>
    %cst_49 = arith.constant dense<0.000000e+00> : vector<8xf32>
    %139 = vector.multi_reduction <add>, %138, %cst_49 [1] : vector<8x8xf32> to vector<8xf32>
    %140 = vector.shape_cast %139 : vector<8xf32> to vector<8x1xf32>
    %141 = tpu.reciprocal %140 : vector<8x1xf32> -> vector<8x1xf32>
    %142 = vector.broadcast %141 : vector<8x1xf32> to vector<8x8xf32>
    %143 = arith.mulf %138, %142 : vector<8x8xf32>
    %cst_50 = arith.constant dense<0.000000e+00> : vector<8x8xf32>
    %144 = tpu.matmul %143, %128, %cst_50 {dimension_numbers = #tpu.dot_dimension_numbers<[1], [0], [0], [1], [0, 0, 1, 1], [], []>} : vector<8x8xf32>, vector<8x8xf32>, vector<8x8xf32> -> vector<8x8xf32>
    %145 = vector.extract_strided_slice %7 {offsets = [8, 24], sizes = [8, 8], strides = [1, 1]} : vector<16x96xf32> to vector<8x8xf32>
    %146 = vector.extract_strided_slice %7 {offsets = [8, 56], sizes = [8, 8], strides = [1, 1]} : vector<16x96xf32> to vector<8x8xf32>
    %147 = vector.extract_strided_slice %7 {offsets = [8, 88], sizes = [8, 8], strides = [1, 1]} : vector<16x96xf32> to vector<8x8xf32>
    %cst_51 = arith.constant dense<0.000000e+00> : vector<8x8xf32>
    %148 = tpu.matmul %145, %146, %cst_51 {dimension_numbers = #tpu.dot_dimension_numbers<[1], [1], [0], [0], [0, 0, 1, 0], [], []>} : vector<8x8xf32>, vector<8x8xf32>, vector<8x8xf32> -> vector<8x8xf32>
    %cst_52 = arith.constant 0.353553385 : f32
    %149 = vector.broadcast %cst_52 : f32 to vector<8x8xf32>
    %150 = arith.mulf %148, %149 : vector<8x8xf32>
    %cst_53 = arith.constant 0xFF800000 : f32
    %151 = vector.broadcast %cst_53 : f32 to vector<8x8xf32>
    %152 = arith.select %10, %150, %151 : vector<8x8xi1>, vector<8x8xf32>
    %cst_54 = arith.constant dense<0xFF800000> : vector<8xf32>
    %153 = vector.multi_reduction <maximumf>, %152, %cst_54 [1] : vector<8x8xf32> to vector<8xf32>
    %154 = vector.shape_cast %153 : vector<8xf32> to vector<8x1xf32>
    %155 = vector.broadcast %154 : vector<8x1xf32> to vector<8x8xf32>
    %156 = arith.subf %152, %155 : vector<8x8xf32>
    %157 = math.exp %156 : vector<8x8xf32>
    %cst_55 = arith.constant dense<0.000000e+00> : vector<8xf32>
    %158 = vector.multi_reduction <add>, %157, %cst_55 [1] : vector<8x8xf32> to vector<8xf32>
    %159 = vector.shape_cast %158 : vector<8xf32> to vector<8x1xf32>
    %160 = tpu.reciprocal %159 : vector<8x1xf32> -> vector<8x1xf32>
    %161 = vector.broadcast %160 : vector<8x1xf32> to vector<8x8xf32>
    %162 = arith.mulf %157, %161 : vector<8x8xf32>
    %cst_56 = arith.constant dense<0.000000e+00> : vector<8x8xf32>
    %163 = tpu.matmul %162, %147, %cst_56 {dimension_numbers = #tpu.dot_dimension_numbers<[1], [0], [0], [1], [0, 0, 1, 1], [], []>} : vector<8x8xf32>, vector<8x8xf32>, vector<8x8xf32> -> vector<8x8xf32>
    %164 = tpu.concatenate %106, %125, %144, %163 in 1 : vector<8x8xf32>, vector<8x8xf32>, vector<8x8xf32>, vector<8x8xf32> -> vector<8x32xf32>
    %165 = tpu.concatenate %87, %164 in 0 : vector<8x32xf32>, vector<8x32xf32> -> vector<16x32xf32>
    %cst_57 = arith.constant dense<0.000000e+00> : vector<16x32xf32>
    %166 = tpu.matmul %165, %3, %cst_57 {dimension_numbers = #tpu.dot_dimension_numbers<[1], [0], [0], [1], [0, 0, 1, 1], [], []>} : vector<16x32xf32>, vector<32x32xf32>, vector<16x32xf32> -> vector<16x32xf32>
    %167 = vector.broadcast %4 : vector<1x32xf32> to vector<16x32xf32>
    %168 = arith.addf %166, %167 : vector<16x32xf32>
    %169 = tpu.concatenate %168, %168, %168 in 1 : vector<16x32xf32>, vector<16x32xf32>, vector<16x32xf32> -> vector<16x96xf32>
    %c0_58 = arith.constant 0 : index
    %c0_59 = arith.constant 0 : index
    %170 = vector.load %arg6[%c0_58, %c0_59] : memref<16x96xf32, #tpu.memory_space<vmem>>, vector<16x96xf32>
    tpu.vector_store %arg6[%c0_58, %c0_59], %169 {strides = array<i32>} : memref<16x96xf32, #tpu.memory_space<vmem>>, vector<16x96xf32>,
    return
  }
  func.func @transform_0(%arg0: i32) -> (i32, i32) {
    %c0_i32 = arith.constant 0 : i32
    %c0_i32_0 = arith.constant 0 : i32
    %c0_i32_1 = arith.constant 0 : i32
    return %c0_i32, %c0_i32_0 : i32, i32
  }
  func.func @transform_1(%arg0: i32) -> (i32, i32) {
    %c0_i32 = arith.constant 0 : i32
    %c0_i32_0 = arith.constant 0 : i32
    %c0_i32_1 = arith.constant 0 : i32
    return %c0_i32, %c0_i32_0 : i32, i32
  }
  func.func @transform_2(%arg0: i32) -> (i32, i32) {
    %c0_i32 = arith.constant 0 : i32
    %c0_i32_0 = arith.constant 0 : i32
    %c0_i32_1 = arith.constant 0 : i32
    return %c0_i32, %c0_i32_0 : i32, i32
  }
  func.func @transform_3(%arg0: i32) -> (i32, i32) {
    %c0_i32 = arith.constant 0 : i32
    %c0_i32_0 = arith.constant 0 : i32
    %c0_i32_1 = arith.constant 0 : i32
    return %c0_i32, %c0_i32_0 : i32, i32
  }
  func.func @transform_4(%arg0: i32) -> (i32, i32) {
    %c0_i32 = arith.constant 0 : i32
    %c0_i32_0 = arith.constant 0 : i32
    %c0_i32_1 = arith.constant 0 : i32
    return %c0_i32, %c0_i32_0 : i32, i32
  }
  func.func @transform_5(%arg0: i32) -> (i32, i32) {
    %c0_i32 = arith.constant 0 : i32
    %c0_i32_0 = arith.constant 0 : i32
    %c0_i32_1 = arith.constant 0 : i32
    return %c0_i32, %c0_i32_0 : i32, i32
  }
}

</mosaic_0001>

<llo_original>
// kernel: causal_self_attention.1
$region0: #{causal_self_attention.1}
  #allocation0 [shape = 'u32[]', space=smem, size = 0x4, offset = 0x4, fixed_abs, tag = 'smem constant byte address 0x4 - core index']
  #allocation1 [shape = 'u32[144,128]{1,0:T(1,128)}', space=vmem, size = 0x12000, scoped, tag = 'internal scratch']
  %s0 = inlined_call_operand.vmem [shape: f32[16,32], index: 0, kind: input, shape index: {}]
  %s1 = inlined_call_operand.vmem [shape: f32[32,96], index: 1, kind: input, shape index: {}]
  %s2 = inlined_call_operand.vmem [shape: f32[1,96], index: 2, kind: input, shape index: {}]
  %s3 = inlined_call_operand.vmem [shape: f32[32,32], index: 3, kind: input, shape index: {}]
  %s4 = inlined_call_operand.vmem [shape: f32[1,32], index: 4, kind: input, shape index: {}]
  %s5 = inlined_call_operand.vmem [shape: f32[16,96], index: 5, kind: output, shape index: {}]
  %s6 = sld [smem:[#allocation0]]
  $region30: #{causal_self_attention.1} parent=0
    _
  %s8 = ssub.s32 1, %s6
  %s9 = scalar_select 0, %s8, %s6
  // Predicated region
  $region2: #{causal_self_attention.1} parent=0 // pred_check
    _
  $region3: #{causal_self_attention.1} parent=0 // pred_check_branch
    %11 = sbr.rel (0) target = $region5
  $region4: #{causal_self_attention.1} parent=0 // pred_region
    _
  $region5: #{causal_self_attention.1} parent=0 // pred_fallthru
    _
  // Predicated region
  $region6: #{causal_self_attention.1} parent=0 // pred_check
    _
  $region7: #{causal_self_attention.1} parent=0 // pred_check_branch
    %13 = sbr.rel (0) target = $region9
  $region8: #{causal_self_attention.1} parent=0 // pred_region
    _
  $region9: #{causal_self_attention.1} parent=0 // pred_fallthru
    _
  // Predicated region
  $region10: #{causal_self_attention.1} parent=0 // pred_check
    _
  $region11: #{causal_self_attention.1} parent=0 // pred_check_branch
    %15 = sbr.rel (0) target = $region13
  $region12: #{causal_self_attention.1} parent=0 // pred_region
    _
  $region13: #{causal_self_attention.1} parent=0 // pred_fallthru
    _
  // Predicated region
  $region14: #{causal_self_attention.1} parent=0 // pred_check
    _
  $region15: #{causal_self_attention.1} parent=0 // pred_check_branch
    %17 = sbr.rel (0) target = $region17
  $region16: #{causal_self_attention.1} parent=0 // pred_region
    _
  $region17: #{causal_self_attention.1} parent=0 // pred_fallthru
    _
  // Predicated region
  $region18: #{causal_self_attention.1} parent=0 // pred_check
    _
  $region19: #{causal_self_attention.1} parent=0 // pred_check_branch
    %19 = sbr.rel (0) target = $region21
  $region20: #{causal_self_attention.1} parent=0 // pred_region
    _
  $region21: #{causal_self_attention.1} parent=0 // pred_fallthru
    _
  %v20 = vld [vmem:[%s0] sm:$0xff]
  %v21 = vld [vmem:[%s0 + $0x8] sm:$0xff]
  %v22 = vld [vmem:[%s1] sm:$0xff]
  %v23 = vld [vmem:[%s1 + $0x8] sm:$0xff]
  %v24 = vld [vmem:[%s1 + $0x10] sm:$0xff]
  %v25 = vld [vmem:[%s1 + $0x18] sm:$0xff]
  %v26 = vld [vmem:[%s2] sm:$0x1]
  %v27 = vld [vmem:[%s3] sm:$0xff]
  %v28 = vld [vmem:[%s3 + $0x8] sm:$0xff]
  %v29 = vld [vmem:[%s3 + $0x10] sm:$0xff]
  %v30 = vld [vmem:[%s3 + $0x18] sm:$0xff]
  %v31 = vld [vmem:[%s4] sm:$0x1]
  %v33 = vlaneseq
  %v34 = vshrl.u32 %v33, 7
  %v35 = vsub.s32 0, %v34
  %v36 = vrot.slane %v26, %v35
  %vm38 = vcmask 261120
  %v40 = vsel %vm38, %v20, 0
  %v43 = vsel %vm38, %v21, 0
  %45 = vmatprep.subr.mxu0 0.0
  %46 = vmatpush1.msra.mxu0 %v22
  %47 = vmatprep.subr.mxu0 0.0
  %48 = vmatpush1.msra.mxu0 %v23
  %49 = vmatprep.subr.mxu0 0.0
  %50 = vmatpush1.msra.mxu0 %v24
  %51 = vmatprep.subr.mxu0 0.0
  %52 = vmatpush1.msra.mxu0 %v25
  %53 = vmatprep.subr.mxu0 0.0
  %54 = vmatpush1.msra.mxu0 0.0
  %55 = vmatprep.subr.mxu0 0.0
  %56 = vmatpush1.msra.mxu0 0.0
  %57 = vmatprep.subr.mxu0 0.0
  %58 = vmatpush1.msra.mxu0 0.0
  %59 = vmatprep.subr.mxu0 0.0
  %60 = vmatpush1.msra.mxu0 0.0
  %61 = vmatprep.subr.mxu0 0.0
  %62 = vmatpush1.msra.mxu0 0.0
  %63 = vmatprep.subr.mxu0 0.0
  %64 = vmatpush1.msra.mxu0 0.0
  %65 = vmatprep.subr.mxu0 0.0
  %66 = vmatpush1.msra.mxu0 0.0
  %67 = vmatprep.subr.mxu0 0.0
  %68 = vmatpush1.msra.mxu0 0.0
  %69 = vmatprep.subr.mxu0 0.0
  %70 = vmatpush1.msra.mxu0 0.0
  %71 = vmatprep.subr.mxu0 0.0
  %72 = vmatpush1.msra.mxu0 0.0
  %73 = vmatprep.subr.mxu0 0.0
  %74 = vmatpush1.msra.mxu0 0.0
  %75 = vmatprep.subr.mxu0 0.0
  %76 = vmatpush1.msra.mxu0 0.0
  %77 = vmatprep.subr.mxu0 0.0
  %78 = vmatpush1.msra.mxu0 0.0
  %79 = vmatprep.subr.mxu0 0.0
  %80 = vmatpush1.msra.mxu0 0.0
  %81 = vmatprep.subr.mxu0 0.0
  %82 = vmatpush1.msra.mxu0 0.0
  %83 = vmatprep.subr.mxu0 0.0
  %84 = vmatpush1.msra.mxu0 0.0
  %85 = vmatprep.subr.mxu0 0.0
  %86 = vmatpush1.msra.mxu0 0.0
  %87 = vmatprep.subr.mxu0 0.0
  %88 = vmatpush1.msra.mxu0 0.0
  %89 = vmatprep.subr.mxu0 0.0
  %90 = vmatpush1.msra.mxu0 0.0
  %91 = vmatprep.subr.mxu0 0.0
  %92 = vmatpush1.msra.mxu0 0.0
  %93 = vmatprep.subr.mxu0 0.0
  %94 = vmatpush1.msra.mxu0 0.0
  %95 = vmatprep.subr.mxu0 0.0
  %96 = vmatpush1.msra.mxu0 0.0
  %97 = vmatprep.subr.mxu0 0.0
  %98 = vmatpush1.msra.mxu0 0.0
  %99 = vmatprep.subr.mxu0 0.0
  %100 = vmatpush1.msra.mxu0 0.0
  %101 = vmatprep.subr.mxu0 0.0
  %102 = vmatpush1.msra.mxu0 0.0
  %103 = vmatprep.subr.mxu0 0.0
  %104 = vmatpush1.msra.mxu0 0.0
  %105 = vmatprep.subr.mxu0 0.0
  %106 = vmatpush1.msra.mxu0 0.0
  %107 = vmatprep.subr.mxu0 0.0
  %108 = vmatpush1.msra.mxu0 0.0
  %109 = vmatprep.mubr.f32.mxu0 0.0
  %110 = vmatmul.mubr.f32.gmra.mrb[0].mxu0 %v40
  %v111 = vpop.f32.mrb[0].mxu0
  %v112 = vadd.f32 %v36, %v111
  %v113 = vpop.f32.mrb[0].mxu0
  %114 = vmatprep.mubr.f32.mxu0 0.0
  %115 = vmatmul.mubr.f32.gmra.mrb[0].mxu0 %v43
  %v116 = vpop.f32.mrb[0].mxu0
  %v117 = vadd.f32 %v36, %v116
  %v118 = vpop.f32.mrb[0].mxu0
  %119 = vdwg.mxu0
  %v120 = vlaneseq
  %v121 = vshrl.u32 %v120, 7
  %v122 = vlaneseq
  %v123 = vand.u32 %v122, 127
  %vm124 = vcmp.le.s32.totalorder %v123, %v121
  %126 = vrot.lane.b32.xlu0 %v112, 96
  %v127 = vpop.permute.xlu0 %126
  %vm128 = vcmask 64512
  %v129 = vsel %vm128, %v112, 0
  %v131 = vsel %vm128, %v127, 0
  %133 = vmatprep.subr.mxu0 0.0
  %134 = vmatpush1.xpose.msra.mxu0 %v131
  %135 = vmatprep.subr.mxu0 0.0
  %136 = vmatpush1.xpose.msra.mxu0 0.0
  %137 = vmatprep.subr.mxu0 0.0
  %138 = vmatpush1.xpose.msra.mxu0 0.0
  %139 = vmatprep.subr.mxu0 0.0
  %140 = vmatpush1.xpose.msra.mxu0 0.0
  %141 = vmatprep.subr.mxu0 0.0
  %142 = vmatpush1.xpose.msra.mxu0 0.0
  %143 = vmatprep.subr.mxu0 0.0
  %144 = vmatpush1.xpose.msra.mxu0 0.0
  %145 = vmatprep.subr.mxu0 0.0
  %146 = vmatpush1.xpose.msra.mxu0 0.0
  %147 = vmatprep.subr.mxu0 0.0
  %148 = vmatpush1.xpose.msra.mxu0 0.0
  %149 = vmatprep.subr.mxu0 0.0
  %150 = vmatpush1.xpose.msra.mxu0 0.0
  %151 = vmatprep.subr.mxu0 0.0
  %152 = vmatpush1.xpose.msra.mxu0 0.0
  %153 = vmatprep.subr.mxu0 0.0
  %154 = vmatpush1.xpose.msra.mxu0 0.0
  %155 = vmatprep.subr.mxu0 0.0
  %156 = vmatpush1.xpose.msra.mxu0 0.0
  %157 = vmatprep.subr.mxu0 0.0
  %158 = vmatpush1.xpose.msra.mxu0 0.0
  %159 = vmatprep.subr.mxu0 0.0
  %160 = vmatpush1.xpose.msra.mxu0 0.0
  %161 = vmatprep.subr.mxu0 0.0
  %162 = vmatpush1.xpose.msra.mxu0 0.0
  %163 = vmatprep.subr.mxu0 0.0
  %164 = vmatpush1.xpose.msra.mxu0 0.0
  %165 = vmatprep.subr.mxu0 0.0
  %166 = vmatpush1.xpose.msra.mxu0 0.0
  %167 = vmatprep.subr.mxu0 0.0
  %168 = vmatpush1.xpose.msra.mxu0 0.0
  %169 = vmatprep.subr.mxu0 0.0
  %170 = vmatpush1.xpose.msra.mxu0 0.0
  %171 = vmatprep.subr.mxu0 0.0
  %172 = vmatpush1.xpose.msra.mxu0 0.0
  %173 = vmatprep.subr.mxu0 0.0
  %174 = vmatpush1.xpose.msra.mxu0 0.0
  %175 = vmatprep.subr.mxu0 0.0
  %176 = vmatpush1.xpose.msra.mxu0 0.0
  %177 = vmatprep.subr.mxu0 0.0
  %178 = vmatpush1.xpose.msra.mxu0 0.0
  %179 = vmatprep.subr.mxu0 0.0
  %180 = vmatpush1.xpose.msra.mxu0 0.0
  %181 = vmatprep.subr.mxu0 0.0
  %182 = vmatpush1.xpose.msra.mxu0 0.0
  %183 = vmatprep.subr.mxu0 0.0
  %184 = vmatpush1.xpose.msra.mxu0 0.0
  %185 = vmatprep.subr.mxu0 0.0
  %186 = vmatpush1.xpose.msra.mxu0 0.0
  %187 = vmatprep.subr.mxu0 0.0
  %188 = vmatpush1.xpose.msra.mxu0 0.0
  %189 = vmatprep.subr.mxu0 0.0
  %190 = vmatpush1.xpose.msra.mxu0 0.0
  %191 = vmatprep.subr.mxu0 0.0
  %192 = vmatpush1.xpose.msra.mxu0 0.0
  %193 = vmatprep.subr.mxu0 0.0
  %194 = vmatpush1.xpose.msra.mxu0 0.0
  %195 = vmatprep.subr.mxu0 0.0
  %196 = vmatpush1.xpose.msra.mxu0 0.0
  %197 = vmatprep.mubr.f32.mxu0 0.0
  %198 = vmatmul.mubr.f32.gmra.mrb[0].mxu0 %v129
  %v199 = vpop.f32.mrb[0].mxu0
  %v200 = vadd.f32 0.0, %v199
  %v201 = vpop.f32.mrb[0].mxu0
  %202 = vdwg.mxu0
  %v203 = vmul.f32 %v200, 0.35355338
  %v204 = vsel %vm124, %v203, -inf
  %v205 = vsel %vm128, %v204, -inf
  %206 = vmax.xlane.f32.xlu0 %v205
  %v207 = vpop.xlane.xlu0 %206
  %v208 = vsub.f32 %v204, %v207
  %v209 = vmul.f32 %v208, 1.442695
  %v210 = vpow.pop %v209
  %v211 = vsel %vm128, %v210, 0.0
  %212 = vadd.xlane.f32.xlu0 %v211
  %v213 = vpop.xlane.xlu0 %212
  %v214 = vrcp.pop %v213
  %v215 = vmul.f32 %v210, %v214
  %216 = vrot.lane.b32.xlu0 %v112, 64
  %v217 = vpop.permute.xlu0 %216
  %v220 = vsel %vm128, %v215, 0
  %222 = vmatprep.subr.mxu0 0.0
  %223 = vmatpush1.msra.mxu0 %v217
  %224 = vmatprep.subr.mxu0 0.0
  %225 = vmatpush1.msra.mxu0 0.0
  %226 = vmatprep.subr.mxu0 0.0
  %227 = vmatpush1.msra.mxu0 0.0
  %228 = vmatprep.subr.mxu0 0.0
  %229 = vmatpush1.msra.mxu0 0.0
  %230 = vmatprep.subr.mxu0 0.0
  %231 = vmatpush1.msra.mxu0 0.0
  %232 = vmatprep.subr.mxu0 0.0
  %233 = vmatpush1.msra.mxu0 0.0
  %234 = vmatprep.subr.mxu0 0.0
  %235 = vmatpush1.msra.mxu0 0.0
  %236 = vmatprep.subr.mxu0 0.0
  %237 = vmatpush1.msra.mxu0 0.0
  %238 = vmatprep.subr.mxu0 0.0
  %239 = vmatpush1.msra.mxu0 0.0
  %240 = vmatprep.subr.mxu0 0.0
  %241 = vmatpush1.msra.mxu0 0.0
  %242 = vmatprep.subr.mxu0 0.0
  %243 = vmatpush1.msra.mxu0 0.0
  %244 = vmatprep.subr.mxu0 0.0
  %245 = vmatpush1.msra.mxu0 0.0
  %246 = vmatprep.subr.mxu0 0.0
  %247 = vmatpush1.msra.mxu0 0.0
  %248 = vmatprep.subr.mxu0 0.0
  %249 = vmatpush1.msra.mxu0 0.0
  %250 = vmatprep.subr.mxu0 0.0
  %251 = vmatpush1.msra.mxu0 0.0
  %252 = vmatprep.subr.mxu0 0.0
  %253 = vmatpush1.msra.mxu0 0.0
  %254 = vmatprep.subr.mxu0 0.0
  %255 = vmatpush1.msra.mxu0 0.0
  %256 = vmatprep.subr.mxu0 0.0
  %257 = vmatpush1.msra.mxu0 0.0
  %258 = vmatprep.subr.mxu0 0.0
  %259 = vmatpush1.msra.mxu0 0.0
  %260 = vmatprep.subr.mxu0 0.0
  %261 = vmatpush1.msra.mxu0 0.0
  %262 = vmatprep.subr.mxu0 0.0
  %263 = vmatpush1.msra.mxu0 0.0
  %264 = vmatprep.subr.mxu0 0.0
  %265 = vmatpush1.msra.mxu0 0.0
  %266 = vmatprep.subr.mxu0 0.0
  %267 = vmatpush1.msra.mxu0 0.0
  %268 = vmatprep.subr.mxu0 0.0
  %269 = vmatpush1.msra.mxu0 0.0
  %270 = vmatprep.subr.mxu0 0.0
  %271 = vmatpush1.msra.mxu0 0.0
  %272 = vmatprep.subr.mxu0 0.0
  %273 = vmatpush1.msra.mxu0 0.0
  %274 = vmatprep.subr.mxu0 0.0
  %275 = vmatpush1.msra.mxu0 0.0
  %276 = vmatprep.subr.mxu0 0.0
  %277 = vmatpush1.msra.mxu0 0.0
  %278 = vmatprep.subr.mxu0 0.0
  %279 = vmatpush1.msra.mxu0 0.0
  %280 = vmatprep.subr.mxu0 0.0
  %281 = vmatpush1.msra.mxu0 0.0
  %282 = vmatprep.subr.mxu0 0.0
  %283 = vmatpush1.msra.mxu0 0.0
  %284 = vmatprep.subr.mxu0 0.0
  %285 = vmatpush1.msra.mxu0 0.0
  %286 = vmatprep.mubr.f32.mxu0 0.0
  %287 = vmatmul.mubr.f32.gmra.mrb[0].mxu0 %v220
  %v288 = vpop.f32.mrb[0].mxu0
  %v289 = vadd.f32 0.0, %v288
  %v290 = vpop.f32.mrb[0].mxu0
  %291 = vdwg.mxu0
  %292 = vrot.lane.b32.xlu0 %v112, 120
  %v293 = vpop.permute.xlu0 %292
  %294 = vrot.lane.b32.xlu0 %v112, 88
  %v295 = vpop.permute.xlu0 %294
  %v296 = vsel %vm128, %v293, 0
  %v298 = vsel %vm128, %v295, 0
  %300 = vmatprep.subr.mxu0 0.0
  %301 = vmatpush1.xpose.msra.mxu0 %v298
  %302 = vmatprep.subr.mxu0 0.0
  %303 = vmatpush1.xpose.msra.mxu0 0.0
  %304 = vmatprep.subr.mxu0 0.0
  %305 = vmatpush1.xpose.msra.mxu0 0.0
  %306 = vmatprep.subr.mxu0 0.0
  %307 = vmatpush1.xpose.msra.mxu0 0.0
  %308 = vmatprep.subr.mxu0 0.0
  %309 = vmatpush1.xpose.msra.mxu0 0.0
  %310 = vmatprep.subr.mxu0 0.0
  %311 = vmatpush1.xpose.msra.mxu0 0.0
  %312 = vmatprep.subr.mxu0 0.0
  %313 = vmatpush1.xpose.msra.mxu0 0.0
  %314 = vmatprep.subr.mxu0 0.0
  %315 = vmatpush1.xpose.msra.mxu0 0.0
  %316 = vmatprep.subr.mxu0 0.0
  %317 = vmatpush1.xpose.msra.mxu0 0.0
  %318 = vmatprep.subr.mxu0 0.0
  %319 = vmatpush1.xpose.msra.mxu0 0.0
  %320 = vmatprep.subr.mxu0 0.0
  %321 = vmatpush1.xpose.msra.mxu0 0.0
  %322 = vmatprep.subr.mxu0 0.0
  %323 = vmatpush1.xpose.msra.mxu0 0.0
  %324 = vmatprep.subr.mxu0 0.0
  %325 = vmatpush1.xpose.msra.mxu0 0.0
  %326 = vmatprep.subr.mxu0 0.0
  %327 = vmatpush1.xpose.msra.mxu0 0.0
  %328 = vmatprep.subr.mxu0 0.0
  %329 = vmatpush1.xpose.msra.mxu0 0.0
  %330 = vmatprep.subr.mxu0 0.0
  %331 = vmatpush1.xpose.msra.mxu0 0.0
  %332 = vmatprep.subr.mxu0 0.0
  %333 = vmatpush1.xpose.msra.mxu0 0.0
  %334 = vmatprep.subr.mxu0 0.0
  %335 = vmatpush1.xpose.msra.mxu0 0.0
  %336 = vmatprep.subr.mxu0 0.0
  %337 = vmatpush1.xpose.msra.mxu0 0.0
  %338 = vmatprep.subr.mxu0 0.0
  %339 = vmatpush1.xpose.msra.mxu0 0.0
  %340 = vmatprep.subr.mxu0 0.0
  %341 = vmatpush1.xpose.msra.mxu0 0.0
  %342 = vmatprep.subr.mxu0 0.0
  %343 = vmatpush1.xpose.msra.mxu0 0.0
  %344 = vmatprep.subr.mxu0 0.0
  %345 = vmatpush1.xpose.msra.mxu0 0.0
  %346 = vmatprep.subr.mxu0 0.0
  %347 = vmatpush1.xpose.msra.mxu0 0.0
  %348 = vmatprep.subr.mxu0 0.0
  %349 = vmatpush1.xpose.msra.mxu0 0.0
  %350 = vmatprep.subr.mxu0 0.0
  %351 = vmatpush1.xpose.msra.mxu0 0.0
  %352 = vmatprep.subr.mxu0 0.0
  %353 = vmatpush1.xpose.msra.mxu0 0.0
  %354 = vmatprep.subr.mxu0 0.0
  %355 = vmatpush1.xpose.msra.mxu0 0.0
  %356 = vmatprep.subr.mxu0 0.0
  %357 = vmatpush1.xpose.msra.mxu0 0.0
  %358 = vmatprep.subr.mxu0 0.0
  %359 = vmatpush1.xpose.msra.mxu0 0.0
  %360 = vmatprep.subr.mxu0 0.0
  %361 = vmatpush1.xpose.msra.mxu0 0.0
  %362 = vmatprep.subr.mxu0 0.0
  %363 = vmatpush1.xpose.msra.mxu0 0.0
  %364 = vmatprep.mubr.f32.mxu0 0.0
  %365 = vmatmul.mubr.f32.gmra.mrb[0].mxu0 %v296
  %v366 = vpop.f32.mrb[0].mxu0
  %v367 = vadd.f32 0.0, %v366
  %v368 = vpop.f32.mrb[0].mxu0
  %369 = vdwg.mxu0
  %v370 = vmul.f32 %v367, 0.35355338
  %v371 = vsel %vm124, %v370, -inf
  %v372 = vsel %vm128, %v371, -inf
  %373 = vmax.xlane.f32.xlu0 %v372
  %v374 = vpop.xlane.xlu0 %373
  %v375 = vsub.f32 %v371, %v374
  %v376 = vmul.f32 %v375, 1.442695
  %v377 = vpow.pop %v376
  %v378 = vsel %vm128, %v377, 0.0
  %379 = vadd.xlane.f32.xlu0 %v378
  %v380 = vpop.xlane.xlu0 %379
  %v381 = vrcp.pop %v380
  %v382 = vmul.f32 %v377, %v381
  %383 = vrot.lane.b32.xlu0 %v112, 56
  %v384 = vpop.permute.xlu0 %383
  %v387 = vsel %vm128, %v382, 0
  %389 = vmatprep.subr.mxu0 0.0
  %390 = vmatpush1.msra.mxu0 %v384
  %391 = vmatprep.subr.mxu0 0.0
  %392 = vmatpush1.msra.mxu0 0.0
  %393 = vmatprep.subr.mxu0 0.0
  %394 = vmatpush1.msra.mxu0 0.0
  %395 = vmatprep.subr.mxu0 0.0
  %396 = vmatpush1.msra.mxu0 0.0
  %397 = vmatprep.subr.mxu0 0.0
  %398 = vmatpush1.msra.mxu0 0.0
  %399 = vmatprep.subr.mxu0 0.0
  %400 = vmatpush1.msra.mxu0 0.0
  %401 = vmatprep.subr.mxu0 0.0
  %402 = vmatpush1.msra.mxu0 0.0
  %403 = vmatprep.subr.mxu0 0.0
  %404 = vmatpush1.msra.mxu0 0.0
  %405 = vmatprep.subr.mxu0 0.0
  %406 = vmatpush1.msra.mxu0 0.0
  %407 = vmatprep.subr.mxu0 0.0
  %408 = vmatpush1.msra.mxu0 0.0
  %409 = vmatprep.subr.mxu0 0.0
  %410 = vmatpush1.msra.mxu0 0.0
  %411 = vmatprep.subr.mxu0 0.0
  %412 = vmatpush1.msra.mxu0 0.0
  %413 = vmatprep.subr.mxu0 0.0
  %414 = vmatpush1.msra.mxu0 0.0
  %415 = vmatprep.subr.mxu0 0.0
  %416 = vmatpush1.msra.mxu0 0.0
  %417 = vmatprep.subr.mxu0 0.0
  %418 = vmatpush1.msra.mxu0 0.0
  %419 = vmatprep.subr.mxu0 0.0
  %420 = vmatpush1.msra.mxu0 0.0
  %421 = vmatprep.subr.mxu0 0.0
  %422 = vmatpush1.msra.mxu0 0.0
  %423 = vmatprep.subr.mxu0 0.0
  %424 = vmatpush1.msra.mxu0 0.0
  %425 = vmatprep.subr.mxu0 0.0
  %426 = vmatpush1.msra.mxu0 0.0
  %427 = vmatprep.subr.mxu0 0.0
  %428 = vmatpush1.msra.mxu0 0.0
  %429 = vmatprep.subr.mxu0 0.0
  %430 = vmatpush1.msra.mxu0 0.0
  %431 = vmatprep.subr.mxu0 0.0
  %432 = vmatpush1.msra.mxu0 0.0
  %433 = vmatprep.subr.mxu0 0.0
  %434 = vmatpush1.msra.mxu0 0.0
  %435 = vmatprep.subr.mxu0 0.0
  %436 = vmatpush1.msra.mxu0 0.0
  %437 = vmatprep.subr.mxu0 0.0
  %438 = vmatpush1.msra.mxu0 0.0
  %439 = vmatprep.subr.mxu0 0.0
  %440 = vmatpush1.msra.mxu0 0.0
  %441 = vmatprep.subr.mxu0 0.0
  %442 = vmatpush1.msra.mxu0 0.0
  %443 = vmatprep.subr.mxu0 0.0
  %444 = vmatpush1.msra.mxu0 0.0
  %445 = vmatprep.subr.mxu0 0.0
  %446 = vmatpush1.msra.mxu0 0.0
  %447 = vmatprep.subr.mxu0 0.0
  %448 = vmatpush1.msra.mxu0 0.0
  %449 = vmatprep.subr.mxu0 0.0
  %450 = vmatpush1.msra.mxu0 0.0
  %451 = vmatprep.subr.mxu0 0.0
  %452 = vmatpush1.msra.mxu0 0.0
  %453 = vmatprep.mubr.f32.mxu0 0.0
  %454 = vmatmul.mubr.f32.gmra.mrb[0].mxu0 %v387
  %v455 = vpop.f32.mrb[0].mxu0
  %v456 = vadd.f32 0.0, %v455
  %v457 = vpop.f32.mrb[0].mxu0
  %458 = vdwg.mxu0
  %459 = vrot.lane.b32.xlu0 %v112, 112
  %v460 = vpop.permute.xlu0 %459
  %461 = vrot.lane.b32.xlu0 %v112, 80
  %v462 = vpop.permute.xlu0 %461
  %v463 = vsel %vm128, %v460, 0
  %v465 = vsel %vm128, %v462, 0
  %467 = vmatprep.subr.mxu0 0.0
  %468 = vmatpush1.xpose.msra.mxu0 %v465
  %469 = vmatprep.subr.mxu0 0.0
  %470 = vmatpush1.xpose.msra.mxu0 0.0
  %471 = vmatprep.subr.mxu0 0.0
  %472 = vmatpush1.xpose.msra.mxu0 0.0
  %473 = vmatprep.subr.mxu0 0.0
  %474 = vmatpush1.xpose.msra.mxu0 0.0
  %475 = vmatprep.subr.mxu0 0.0
  %476 = vmatpush1.xpose.msra.mxu0 0.0
  %477 = vmatprep.subr.mxu0 0.0
  %478 = vmatpush1.xpose.msra.mxu0 0.0
  %479 = vmatprep.subr.mxu0 0.0
  %480 = vmatpush1.xpose.msra.mxu0 0.0
  %481 = vmatprep.subr.mxu0 0.0
  %482 = vmatpush1.xpose.msra.mxu0 0.0
  %483 = vmatprep.subr.mxu0 0.0
  %484 = vmatpush1.xpose.msra.mxu0 0.0
  %485 = vmatprep.subr.mxu0 0.0
  %486 = vmatpush1.xpose.msra.mxu0 0.0
  %487 = vmatprep.subr.mxu0 0.0
  %488 = vmatpush1.xpose.msra.mxu0 0.0
  %489 = vmatprep.subr.mxu0 0.0
  %490 = vmatpush1.xpose.msra.mxu0 0.0
  %491 = vmatprep.subr.mxu0 0.0
  %492 = vmatpush1.xpose.msra.mxu0 0.0
  %493 = vmatprep.subr.mxu0 0.0
  %494 = vmatpush1.xpose.msra.mxu0 0.0
  %495 = vmatprep.subr.mxu0 0.0
  %496 = vmatpush1.xpose.msra.mxu0 0.0
  %497 = vmatprep.subr.mxu0 0.0
  %498 = vmatpush1.xpose.msra.mxu0 0.0
  %499 = vmatprep.subr.mxu0 0.0
  %500 = vmatpush1.xpose.msra.mxu0 0.0
  %501 = vmatprep.subr.mxu0 0.0
  %502 = vmatpush1.xpose.msra.mxu0 0.0
  %503 = vmatprep.subr.mxu0 0.0
  %504 = vmatpush1.xpose.msra.mxu0 0.0
  %505 = vmatprep.subr.mxu0 0.0
  %506 = vmatpush1.xpose.msra.mxu0 0.0
  %507 = vmatprep.subr.mxu0 0.0
  %508 = vmatpush1.xpose.msra.mxu0 0.0
  %509 = vmatprep.subr.mxu0 0.0
  %510 = vmatpush1.xpose.msra.mxu0 0.0
  %511 = vmatprep.subr.mxu0 0.0
  %512 = vmatpush1.xpose.msra.mxu0 0.0
  %513 = vmatprep.subr.mxu0 0.0
  %514 = vmatpush1.xpose.msra.mxu0 0.0
  %515 = vmatprep.subr.mxu0 0.0
  %516 = vmatpush1.xpose.msra.mxu0 0.0
  %517 = vmatprep.subr.mxu0 0.0
  %518 = vmatpush1.xpose.msra.mxu0 0.0
  %519 = vmatprep.subr.mxu0 0.0
  %520 = vmatpush1.xpose.msra.mxu0 0.0
  %521 = vmatprep.subr.mxu0 0.0
  %522 = vmatpush1.xpose.msra.mxu0 0.0
  %523 = vmatprep.subr.mxu0 0.0
  %524 = vmatpush1.xpose.msra.mxu0 0.0
  %525 = vmatprep.subr.mxu0 0.0
  %526 = vmatpush1.xpose.msra.mxu0 0.0
  %527 = vmatprep.subr.mxu0 0.0
  %528 = vmatpush1.xpose.msra.mxu0 0.0
  %529 = vmatprep.subr.mxu0 0.0
  %530 = vmatpush1.xpose.msra.mxu0 0.0
  %531 = vmatprep.mubr.f32.mxu0 0.0
  %532 = vmatmul.mubr.f32.gmra.mrb[0].mxu0 %v463
  %v533 = vpop.f32.mrb[0].mxu0
  %v534 = vadd.f32 0.0, %v533
  %v535 = vpop.f32.mrb[0].mxu0
  %536 = vdwg.mxu0
  %v537 = vmul.f32 %v534, 0.35355338
  %v538 = vsel %vm124, %v537, -inf
  %v539 = vsel %vm128, %v538, -inf
  %540 = vmax.xlane.f32.xlu0 %v539
  %v541 = vpop.xlane.xlu0 %540
  %v542 = vsub.f32 %v538, %v541
  %v543 = vmul.f32 %v542, 1.442695
  %v544 = vpow.pop %v543
  %v545 = vsel %vm128, %v544, 0.0
  %546 = vadd.xlane.f32.xlu0 %v545
  %v547 = vpop.xlane.xlu0 %546
  %v548 = vrcp.pop %v547
  %v549 = vmul.f32 %v544, %v548
  %550 = vrot.lane.b32.xlu0 %v112, 48
  %v551 = vpop.permute.xlu0 %550
  %v554 = vsel %vm128, %v549, 0
  %556 = vmatprep.subr.mxu0 0.0
  %557 = vmatpush1.msra.mxu0 %v551
  %558 = vmatprep.subr.mxu0 0.0
  %559 = vmatpush1.msra.mxu0 0.0
  %560 = vmatprep.subr.mxu0 0.0
  %561 = vmatpush1.msra.mxu0 0.0
  %562 = vmatprep.subr.mxu0 0.0
  %563 = vmatpush1.msra.mxu0 0.0
  %564 = vmatprep.subr.mxu0 0.0
  %565 = vmatpush1.msra.mxu0 0.0
  %566 = vmatprep.subr.mxu0 0.0
  %567 = vmatpush1.msra.mxu0 0.0
  %568 = vmatprep.subr.mxu0 0.0
  %569 = vmatpush1.msra.mxu0 0.0
  %570 = vmatprep.subr.mxu0 0.0
  %571 = vmatpush1.msra.mxu0 0.0
  %572 = vmatprep.subr.mxu0 0.0
  %573 = vmatpush1.msra.mxu0 0.0
  %574 = vmatprep.subr.mxu0 0.0
  %575 = vmatpush1.msra.mxu0 0.0
  %576 = vmatprep.subr.mxu0 0.0
  %577 = vmatpush1.msra.mxu0 0.0
  %578 = vmatprep.subr.mxu0 0.0
  %579 = vmatpush1.msra.mxu0 0.0
  %580 = vmatprep.subr.mxu0 0.0
  %581 = vmatpush1.msra.mxu0 0.0
  %582 = vmatprep.subr.mxu0 0.0
  %583 = vmatpush1.msra.mxu0 0.0
  %584 = vmatprep.subr.mxu0 0.0
  %585 = vmatpush1.msra.mxu0 0.0
  %586 = vmatprep.subr.mxu0 0.0
  %587 = vmatpush1.msra.mxu0 0.0
  %588 = vmatprep.subr.mxu0 0.0
  %589 = vmatpush1.msra.mxu0 0.0
  %590 = vmatprep.subr.mxu0 0.0
  %591 = vmatpush1.msra.mxu0 0.0
  %592 = vmatprep.subr.mxu0 0.0
  %593 = vmatpush1.msra.mxu0 0.0
  %594 = vmatprep.subr.mxu0 0.0
  %595 = vmatpush1.msra.mxu0 0.0
  %596 = vmatprep.subr.mxu0 0.0
  %597 = vmatpush1.msra.mxu0 0.0
  %598 = vmatprep.subr.mxu0 0.0
  %599 = vmatpush1.msra.mxu0 0.0
  %600 = vmatprep.subr.mxu0 0.0
  %601 = vmatpush1.msra.mxu0 0.0
  %602 = vmatprep.subr.mxu0 0.0
  %603 = vmatpush1.msra.mxu0 0.0
  %604 = vmatprep.subr.mxu0 0.0
  %605 = vmatpush1.msra.mxu0 0.0
  %606 = vmatprep.subr.mxu0 0.0
  %607 = vmatpush1.msra.mxu0 0.0
  %608 = vmatprep.subr.mxu0 0.0
  %609 = vmatpush1.msra.mxu0 0.0
  %610 = vmatprep.subr.mxu0 0.0
  %611 = vmatpush1.msra.mxu0 0.0
  %612 = vmatprep.subr.mxu0 0.0
  %613 = vmatpush1.msra.mxu0 0.0
  %614 = vmatprep.subr.mxu0 0.0
  %615 = vmatpush1.msra.mxu0 0.0
  %616 = vmatprep.subr.mxu0 0.0
  %617 = vmatpush1.msra.mxu0 0.0
  %618 = vmatprep.subr.mxu0 0.0
  %619 = vmatpush1.msra.mxu0 0.0
  %620 = vmatprep.mubr.f32.mxu0 0.0
  %621 = vmatmul.mubr.f32.gmra.mrb[0].mxu0 %v554
  %v622 = vpop.f32.mrb[0].mxu0
  %v623 = vadd.f32 0.0, %v622
  %v624 = vpop.f32.mrb[0].mxu0
  %625 = vdwg.mxu0
  %626 = vrot.lane.b32.xlu0 %v112, 104
  %v627 = vpop.permute.xlu0 %626
  %628 = vrot.lane.b32.xlu0 %v112, 72
  %v629 = vpop.permute.xlu0 %628
  %v630 = vsel %vm128, %v627, 0
  %v632 = vsel %vm128, %v629, 0
  %634 = vmatprep.subr.mxu0 0.0
  %635 = vmatpush1.xpose.msra.mxu0 %v632
  %636 = vmatprep.subr.mxu0 0.0
  %637 = vmatpush1.xpose.msra.mxu0 0.0
  %638 = vmatprep.subr.mxu0 0.0
  %639 = vmatpush1.xpose.msra.mxu0 0.0
  %640 = vmatprep.subr.mxu0 0.0
  %641 = vmatpush1.xpose.msra.mxu0 0.0
  %642 = vmatprep.subr.mxu0 0.0
  %643 = vmatpush1.xpose.msra.mxu0 0.0
  %644 = vmatprep.subr.mxu0 0.0
  %645 = vmatpush1.xpose.msra.mxu0 0.0
  %646 = vmatprep.subr.mxu0 0.0
  %647 = vmatpush1.xpose.msra.mxu0 0.0
  %648 = vmatprep.subr.mxu0 0.0
  %649 = vmatpush1.xpose.msra.mxu0 0.0
  %650 = vmatprep.subr.mxu0 0.0
  %651 = vmatpush1.xpose.msra.mxu0 0.0
  %652 = vmatprep.subr.mxu0 0.0
  %653 = vmatpush1.xpose.msra.mxu0 0.0
  %654 = vmatprep.subr.mxu0 0.0
  %655 = vmatpush1.xpose.msra.mxu0 0.0
  %656 = vmatprep.subr.mxu0 0.0
  %657 = vmatpush1.xpose.msra.mxu0 0.0
  %658 = vmatprep.subr.mxu0 0.0
  %659 = vmatpush1.xpose.msra.mxu0 0.0
  %660 = vmatprep.subr.mxu0 0.0
  %661 = vmatpush1.xpose.msra.mxu0 0.0
  %662 = vmatprep.subr.mxu0 0.0
  %663 = vmatpush1.xpose.msra.mxu0 0.0
  %664 = vmatprep.subr.mxu0 0.0
  %665 = vmatpush1.xpose.msra.mxu0 0.0
  %666 = vmatprep.subr.mxu0 0.0
  %667 = vmatpush1.xpose.msra.mxu0 0.0
  %668 = vmatprep.subr.mxu0 0.0
  %669 = vmatpush1.xpose.msra.mxu0 0.0
  %670 = vmatprep.subr.mxu0 0.0
  %671 = vmatpush1.xpose.msra.mxu0 0.0
  %672 = vmatprep.subr.mxu0 0.0
  %673 = vmatpush1.xpose.msra.mxu0 0.0
  %674 = vmatprep.subr.mxu0 0.0
  %675 = vmatpush1.xpose.msra.mxu0 0.0
  %676 = vmatprep.subr.mxu0 0.0
  %677 = vmatpush1.xpose.msra.mxu0 0.0
  %678 = vmatprep.subr.mxu0 0.0
  %679 = vmatpush1.xpose.msra.mxu0 0.0
  %680 = vmatprep.subr.mxu0 0.0
  %681 = vmatpush1.xpose.msra.mxu0 0.0
  %682 = vmatprep.subr.mxu0 0.0
  %683 = vmatpush1.xpose.msra.mxu0 0.0
  %684 = vmatprep.subr.mxu0 0.0
  %685 = vmatpush1.xpose.msra.mxu0 0.0
  %686 = vmatprep.subr.mxu0 0.0
  %687 = vmatpush1.xpose.msra.mxu0 0.0
  %688 = vmatprep.subr.mxu0 0.0
  %689 = vmatpush1.xpose.msra.mxu0 0.0
  %690 = vmatprep.subr.mxu0 0.0
  %691 = vmatpush1.xpose.msra.mxu0 0.0
  %692 = vmatprep.subr.mxu0 0.0
  %693 = vmatpush1.xpose.msra.mxu0 0.0
  %694 = vmatprep.subr.mxu0 0.0
  %695 = vmatpush1.xpose.msra.mxu0 0.0
  %696 = vmatprep.subr.mxu0 0.0
  %697 = vmatpush1.xpose.msra.mxu0 0.0
  %698 = vmatprep.mubr.f32.mxu0 0.0
  %699 = vmatmul.mubr.f32.gmra.mrb[0].mxu0 %v630
  %v700 = vpop.f32.mrb[0].mxu0
  %v701 = vadd.f32 0.0, %v700
  %v702 = vpop.f32.mrb[0].mxu0
  %703 = vdwg.mxu0
  %v704 = vmul.f32 %v701, 0.35355338
  %v705 = vsel %vm124, %v704, -inf
  %v706 = vsel %vm128, %v705, -inf
  %707 = vmax.xlane.f32.xlu0 %v706
  %v708 = vpop.xlane.xlu0 %707
  %v709 = vsub.f32 %v705, %v708
  %v710 = vmul.f32 %v709, 1.442695
  %v711 = vpow.pop %v710
  %v712 = vsel %vm128, %v711, 0.0
  %713 = vadd.xlane.f32.xlu0 %v712
  %v714 = vpop.xlane.xlu0 %713
  %v715 = vrcp.pop %v714
  %v716 = vmul.f32 %v711, %v715
  %717 = vrot.lane.b32.xlu0 %v112, 40
  %v718 = vpop.permute.xlu0 %717
  %v721 = vsel %vm128, %v716, 0
  %723 = vmatprep.subr.mxu0 0.0
  %724 = vmatpush1.msra.mxu0 %v718
  %725 = vmatprep.subr.mxu0 0.0
  %726 = vmatpush1.msra.mxu0 0.0
  %727 = vmatprep.subr.mxu0 0.0
  %728 = vmatpush1.msra.mxu0 0.0
  %729 = vmatprep.subr.mxu0 0.0
  %730 = vmatpush1.msra.mxu0 0.0
  %731 = vmatprep.subr.mxu0 0.0
  %732 = vmatpush1.msra.mxu0 0.0
  %733 = vmatprep.subr.mxu0 0.0
  %734 = vmatpush1.msra.mxu0 0.0
  %735 = vmatprep.subr.mxu0 0.0
  %736 = vmatpush1.msra.mxu0 0.0
  %737 = vmatprep.subr.mxu0 0.0
  %738 = vmatpush1.msra.mxu0 0.0
  %739 = vmatprep.subr.mxu0 0.0
  %740 = vmatpush1.msra.mxu0 0.0
  %741 = vmatprep.subr.mxu0 0.0
  %742 = vmatpush1.msra.mxu0 0.0
  %743 = vmatprep.subr.mxu0 0.0
  %744 = vmatpush1.msra.mxu0 0.0
  %745 = vmatprep.subr.mxu0 0.0
  %746 = vmatpush1.msra.mxu0 0.0
  %747 = vmatprep.subr.mxu0 0.0
  %748 = vmatpush1.msra.mxu0 0.0
  %749 = vmatprep.subr.mxu0 0.0
  %750 = vmatpush1.msra.mxu0 0.0
  %751 = vmatprep.subr.mxu0 0.0
  %752 = vmatpush1.msra.mxu0 0.0
  %753 = vmatprep.subr.mxu0 0.0
  %754 = vmatpush1.msra.mxu0 0.0
  %755 = vmatprep.subr.mxu0 0.0
  %756 = vmatpush1.msra.mxu0 0.0
  %757 = vmatprep.subr.mxu0 0.0
  %758 = vmatpush1.msra.mxu0 0.0
  %759 = vmatprep.subr.mxu0 0.0
  %760 = vmatpush1.msra.mxu0 0.0
  %761 = vmatprep.subr.mxu0 0.0
  %762 = vmatpush1.msra.mxu0 0.0
  %763 = vmatprep.subr.mxu0 0.0
  %764 = vmatpush1.msra.mxu0 0.0
  %765 = vmatprep.subr.mxu0 0.0
  %766 = vmatpush1.msra.mxu0 0.0
  %767 = vmatprep.subr.mxu0 0.0
  %768 = vmatpush1.msra.mxu0 0.0
  %769 = vmatprep.subr.mxu0 0.0
  %770 = vmatpush1.msra.mxu0 0.0
  %771 = vmatprep.subr.mxu0 0.0
  %772 = vmatpush1.msra.mxu0 0.0
  %773 = vmatprep.subr.mxu0 0.0
  %774 = vmatpush1.msra.mxu0 0.0
  %775 = vmatprep.subr.mxu0 0.0
  %776 = vmatpush1.msra.mxu0 0.0
  %777 = vmatprep.subr.mxu0 0.0
  %778 = vmatpush1.msra.mxu0 0.0
  %779 = vmatprep.subr.mxu0 0.0
  %780 = vmatpush1.msra.mxu0 0.0
  %781 = vmatprep.subr.mxu0 0.0
  %782 = vmatpush1.msra.mxu0 0.0
  %783 = vmatprep.subr.mxu0 0.0
  %784 = vmatpush1.msra.mxu0 0.0
  %785 = vmatprep.subr.mxu0 0.0
  %786 = vmatpush1.msra.mxu0 0.0
  %787 = vmatprep.mubr.f32.mxu0 0.0
  %788 = vmatmul.mubr.f32.gmra.mrb[0].mxu0 %v721
  %v789 = vpop.f32.mrb[0].mxu0
  %v790 = vadd.f32 0.0, %v789
  %v791 = vpop.f32.mrb[0].mxu0
  %792 = vdwg.mxu0
  %794 = vrot.lane.b32.xlu0 %v456, 8
  %v795 = vpop.permute.xlu0 %794
  %798 = vrot.lane.b32.xlu0 %v623, 16
  %v799 = vpop.permute.xlu0 %798
  %802 = vrot.lane.b32.xlu0 %v790, 24
  %v803 = vpop.permute.xlu0 %802
  %v805 = vsel %vm128, %v289, %v795
  %vm806 = vcmask 130048
  %v807 = vsel %vm806, %v805, %v799
  %vm808 = vcmask 195584
  %v809 = vsel %vm808, %v807, %v803
  %811 = vrot.lane.b32.xlu0 %v117, 96
  %v812 = vpop.permute.xlu0 %811
  %v813 = vsel %vm128, %v117, 0
  %v815 = vsel %vm128, %v812, 0
  %817 = vmatprep.subr.mxu0 0.0
  %818 = vmatpush1.xpose.msra.mxu0 %v815
  %819 = vmatprep.subr.mxu0 0.0
  %820 = vmatpush1.xpose.msra.mxu0 0.0
  %821 = vmatprep.subr.mxu0 0.0
  %822 = vmatpush1.xpose.msra.mxu0 0.0
  %823 = vmatprep.subr.mxu0 0.0
  %824 = vmatpush1.xpose.msra.mxu0 0.0
  %825 = vmatprep.subr.mxu0 0.0
  %826 = vmatpush1.xpose.msra.mxu0 0.0
  %827 = vmatprep.subr.mxu0 0.0
  %828 = vmatpush1.xpose.msra.mxu0 0.0
  %829 = vmatprep.subr.mxu0 0.0
  %830 = vmatpush1.xpose.msra.mxu0 0.0
  %831 = vmatprep.subr.mxu0 0.0
  %832 = vmatpush1.xpose.msra.mxu0 0.0
  %833 = vmatprep.subr.mxu0 0.0
  %834 = vmatpush1.xpose.msra.mxu0 0.0
  %835 = vmatprep.subr.mxu0 0.0
  %836 = vmatpush1.xpose.msra.mxu0 0.0
  %837 = vmatprep.subr.mxu0 0.0
  %838 = vmatpush1.xpose.msra.mxu0 0.0
  %839 = vmatprep.subr.mxu0 0.0
  %840 = vmatpush1.xpose.msra.mxu0 0.0
  %841 = vmatprep.subr.mxu0 0.0
  %842 = vmatpush1.xpose.msra.mxu0 0.0
  %843 = vmatprep.subr.mxu0 0.0
  %844 = vmatpush1.xpose.msra.mxu0 0.0
  %845 = vmatprep.subr.mxu0 0.0
  %846 = vmatpush1.xpose.msra.mxu0 0.0
  %847 = vmatprep.subr.mxu0 0.0
  %848 = vmatpush1.xpose.msra.mxu0 0.0
  %849 = vmatprep.subr.mxu0 0.0
  %850 = vmatpush1.xpose.msra.mxu0 0.0
  %851 = vmatprep.subr.mxu0 0.0
  %852 = vmatpush1.xpose.msra.mxu0 0.0
  %853 = vmatprep.subr.mxu0 0.0
  %854 = vmatpush1.xpose.msra.mxu0 0.0
  %855 = vmatprep.subr.mxu0 0.0
  %856 = vmatpush1.xpose.msra.mxu0 0.0
  %857 = vmatprep.subr.mxu0 0.0
  %858 = vmatpush1.xpose.msra.mxu0 0.0
  %859 = vmatprep.subr.mxu0 0.0
  %860 = vmatpush1.xpose.msra.mxu0 0.0
  %861 = vmatprep.subr.mxu0 0.0
  %862 = vmatpush1.xpose.msra.mxu0 0.0
  %863 = vmatprep.subr.mxu0 0.0
  %864 = vmatpush1.xpose.msra.mxu0 0.0
  %865 = vmatprep.subr.mxu0 0.0
  %866 = vmatpush1.xpose.msra.mxu0 0.0
  %867 = vmatprep.subr.mxu0 0.0
  %868 = vmatpush1.xpose.msra.mxu0 0.0
  %869 = vmatprep.subr.mxu0 0.0
  %870 = vmatpush1.xpose.msra.mxu0 0.0
  %871 = vmatprep.subr.mxu0 0.0
  %872 = vmatpush1.xpose.msra.mxu0 0.0
  %873 = vmatprep.subr.mxu0 0.0
  %874 = vmatpush1.xpose.msra.mxu0 0.0
  %875 = vmatprep.subr.mxu0 0.0
  %876 = vmatpush1.xpose.msra.mxu0 0.0
  %877 = vmatprep.subr.mxu0 0.0
  %878 = vmatpush1.xpose.msra.mxu0 0.0
  %879 = vmatprep.subr.mxu0 0.0
  %880 = vmatpush1.xpose.msra.mxu0 0.0
  %881 = vmatprep.mubr.f32.mxu0 0.0
  %882 = vmatmul.mubr.f32.gmra.mrb[0].mxu0 %v813
  %v883 = vpop.f32.mrb[0].mxu0
  %v884 = vadd.f32 0.0, %v883
  %v885 = vpop.f32.mrb[0].mxu0
  %886 = vdwg.mxu0
  %v887 = vmul.f32 %v884, 0.35355338
  %v888 = vsel %vm124, %v887, -inf
  %v889 = vsel %vm128, %v888, -inf
  %890 = vmax.xlane.f32.xlu0 %v889
  %v891 = vpop.xlane.xlu0 %890
  %v892 = vsub.f32 %v888, %v891
  %v893 = vmul.f32 %v892, 1.442695
  %v894 = vpow.pop %v893
  %v895 = vsel %vm128, %v894, 0.0
  %896 = vadd.xlane.f32.xlu0 %v895
  %v897 = vpop.xlane.xlu0 %896
  %v898 = vrcp.pop %v897
  %v899 = vmul.f32 %v894, %v898
  %900 = vrot.lane.b32.xlu0 %v117, 64
  %v901 = vpop.permute.xlu0 %900
  %v904 = vsel %vm128, %v899, 0
  %906 = vmatprep.subr.mxu0 0.0
  %907 = vmatpush1.msra.mxu0 %v901
  %908 = vmatprep.subr.mxu0 0.0
  %909 = vmatpush1.msra.mxu0 0.0
  %910 = vmatprep.subr.mxu0 0.0
  %911 = vmatpush1.msra.mxu0 0.0
  %912 = vmatprep.subr.mxu0 0.0
  %913 = vmatpush1.msra.mxu0 0.0
  %914 = vmatprep.subr.mxu0 0.0
  %915 = vmatpush1.msra.mxu0 0.0
  %916 = vmatprep.subr.mxu0 0.0
  %917 = vmatpush1.msra.mxu0 0.0
  %918 = vmatprep.subr.mxu0 0.0
  %919 = vmatpush1.msra.mxu0 0.0
  %920 = vmatprep.subr.mxu0 0.0
  %921 = vmatpush1.msra.mxu0 0.0
  %922 = vmatprep.subr.mxu0 0.0
  %923 = vmatpush1.msra.mxu0 0.0
  %924 = vmatprep.subr.mxu0 0.0
  %925 = vmatpush1.msra.mxu0 0.0
  %926 = vmatprep.subr.mxu0 0.0
  %927 = vmatpush1.msra.mxu0 0.0
  %928 = vmatprep.subr.mxu0 0.0
  %929 = vmatpush1.msra.mxu0 0.0
  %930 = vmatprep.subr.mxu0 0.0
  %931 = vmatpush1.msra.mxu0 0.0
  %932 = vmatprep.subr.mxu0 0.0
  %933 = vmatpush1.msra.mxu0 0.0
  %934 = vmatprep.subr.mxu0 0.0
  %935 = vmatpush1.msra.mxu0 0.0
  %936 = vmatprep.subr.mxu0 0.0
  %937 = vmatpush1.msra.mxu0 0.0
  %938 = vmatprep.subr.mxu0 0.0
  %939 = vmatpush1.msra.mxu0 0.0
  %940 = vmatprep.subr.mxu0 0.0
  %941 = vmatpush1.msra.mxu0 0.0
  %942 = vmatprep.subr.mxu0 0.0
  %943 = vmatpush1.msra.mxu0 0.0
  %944 = vmatprep.subr.mxu0 0.0
  %945 = vmatpush1.msra.mxu0 0.0
  %946 = vmatprep.subr.mxu0 0.0
  %947 = vmatpush1.msra.mxu0 0.0
  %948 = vmatprep.subr.mxu0 0.0
  %949 = vmatpush1.msra.mxu0 0.0
  %950 = vmatprep.subr.mxu0 0.0
  %951 = vmatpush1.msra.mxu0 0.0
  %952 = vmatprep.subr.mxu0 0.0
  %953 = vmatpush1.msra.mxu0 0.0
  %954 = vmatprep.subr.mxu0 0.0
  %955 = vmatpush1.msra.mxu0 0.0
  %956 = vmatprep.subr.mxu0 0.0
  %957 = vmatpush1.msra.mxu0 0.0
  %958 = vmatprep.subr.mxu0 0.0
  %959 = vmatpush1.msra.mxu0 0.0
  %960 = vmatprep.subr.mxu0 0.0
  %961 = vmatpush1.msra.mxu0 0.0
  %962 = vmatprep.subr.mxu0 0.0
  %963 = vmatpush1.msra.mxu0 0.0
  %964 = vmatprep.subr.mxu0 0.0
  %965 = vmatpush1.msra.mxu0 0.0
  %966 = vmatprep.subr.mxu0 0.0
  %967 = vmatpush1.msra.mxu0 0.0
  %968 = vmatprep.subr.mxu0 0.0
  %969 = vmatpush1.msra.mxu0 0.0
  %970 = vmatprep.mubr.f32.mxu0 0.0
  %971 = vmatmul.mubr.f32.gmra.mrb[0].mxu0 %v904
  %v972 = vpop.f32.mrb[0].mxu0
  %v973 = vadd.f32 0.0, %v972
  %v974 = vpop.f32.mrb[0].mxu0
  %975 = vdwg.mxu0
  %976 = vrot.lane.b32.xlu0 %v117, 120
  %v977 = vpop.permute.xlu0 %976
  %978 = vrot.lane.b32.xlu0 %v117, 88
  %v979 = vpop.permute.xlu0 %978
  %v980 = vsel %vm128, %v977, 0
  %v982 = vsel %vm128, %v979, 0
  %984 = vmatprep.subr.mxu0 0.0
  %985 = vmatpush1.xpose.msra.mxu0 %v982
  %986 = vmatprep.subr.mxu0 0.0
  %987 = vmatpush1.xpose.msra.mxu0 0.0
  %988 = vmatprep.subr.mxu0 0.0
  %989 = vmatpush1.xpose.msra.mxu0 0.0
  %990 = vmatprep.subr.mxu0 0.0
  %991 = vmatpush1.xpose.msra.mxu0 0.0
  %992 = vmatprep.subr.mxu0 0.0
  %993 = vmatpush1.xpose.msra.mxu0 0.0
  %994 = vmatprep.subr.mxu0 0.0
  %995 = vmatpush1.xpose.msra.mxu0 0.0
  %996 = vmatprep.subr.mxu0 0.0
  %997 = vmatpush1.xpose.msra.mxu0 0.0
  %998 = vmatprep.subr.mxu0 0.0
  %999 = vmatpush1.xpose.msra.mxu0 0.0
  %1000 = vmatprep.subr.mxu0 0.0
  %1001 = vmatpush1.xpose.msra.mxu0 0.0
  %1002 = vmatprep.subr.mxu0 0.0
  %1003 = vmatpush1.xpose.msra.mxu0 0.0
  %1004 = vmatprep.subr.mxu0 0.0
  %1005 = vmatpush1.xpose.msra.mxu0 0.0
  %1006 = vmatprep.subr.mxu0 0.0
  %1007 = vmatpush1.xpose.msra.mxu0 0.0
  %1008 = vmatprep.subr.mxu0 0.0
  %1009 = vmatpush1.xpose.msra.mxu0 0.0
  %1010 = vmatprep.subr.mxu0 0.0
  %1011 = vmatpush1.xpose.msra.mxu0 0.0
  %1012 = vmatprep.subr.mxu0 0.0
  %1013 = vmatpush1.xpose.msra.mxu0 0.0
  %1014 = vmatprep.subr.mxu0 0.0
  %1015 = vmatpush1.xpose.msra.mxu0 0.0
  %1016 = vmatprep.subr.mxu0 0.0
  %1017 = vmatpush1.xpose.msra.mxu0 0.0
  %1018 = vmatprep.subr.mxu0 0.0
  %1019 = vmatpush1.xpose.msra.mxu0 0.0
  %1020 = vmatprep.subr.mxu0 0.0
  %1021 = vmatpush1.xpose.msra.mxu0 0.0
  %1022 = vmatprep.subr.mxu0 0.0
  %1023 = vmatpush1.xpose.msra.mxu0 0.0
  %1024 = vmatprep.subr.mxu0 0.0
  %1025 = vmatpush1.xpose.msra.mxu0 0.0
  %1026 = vmatprep.subr.mxu0 0.0
  %1027 = vmatpush1.xpose.msra.mxu0 0.0
  %1028 = vmatprep.subr.mxu0 0.0
  %1029 = vmatpush1.xpose.msra.mxu0 0.0
  %1030 = vmatprep.subr.mxu0 0.0
  %1031 = vmatpush1.xpose.msra.mxu0 0.0
  %1032 = vmatprep.subr.mxu0 0.0
  %1033 = vmatpush1.xpose.msra.mxu0 0.0
  %1034 = vmatprep.subr.mxu0 0.0
  %1035 = vmatpush1.xpose.msra.mxu0 0.0
  %1036 = vmatprep.subr.mxu0 0.0
  %1037 = vmatpush1.xpose.msra.mxu0 0.0
  %1038 = vmatprep.subr.mxu0 0.0
  %1039 = vmatpush1.xpose.msra.mxu0 0.0
  %1040 = vmatprep.subr.mxu0 0.0
  %1041 = vmatpush1.xpose.msra.mxu0 0.0
  %1042 = vmatprep.subr.mxu0 0.0
  %1043 = vmatpush1.xpose.msra.mxu0 0.0
  %1044 = vmatprep.subr.mxu0 0.0
  %1045 = vmatpush1.xpose.msra.mxu0 0.0
  %1046 = vmatprep.subr.mxu0 0.0
  %1047 = vmatpush1.xpose.msra.mxu0 0.0
  %1048 = vmatprep.mubr.f32.mxu0 0.0
  %1049 = vmatmul.mubr.f32.gmra.mrb[0].mxu0 %v980
  %v1050 = vpop.f32.mrb[0].mxu0
  %v1051 = vadd.f32 0.0, %v1050
  %v1052 = vpop.f32.mrb[0].mxu0
  %1053 = vdwg.mxu0
  %v1054 = vmul.f32 %v1051, 0.35355338
  %v1055 = vsel %vm124, %v1054, -inf
  %v1056 = vsel %vm128, %v1055, -inf
  %1057 = vmax.xlane.f32.xlu0 %v1056
  %v1058 = vpop.xlane.xlu0 %1057
  %v1059 = vsub.f32 %v1055, %v1058
  %v1060 = vmul.f32 %v1059, 1.442695
  %v1061 = vpow.pop %v1060
  %v1062 = vsel %vm128, %v1061, 0.0
  %1063 = vadd.xlane.f32.xlu0 %v1062
  %v1064 = vpop.xlane.xlu0 %1063
  %v1065 = vrcp.pop %v1064
  %v1066 = vmul.f32 %v1061, %v1065
  %1067 = vrot.lane.b32.xlu0 %v117, 56
  %v1068 = vpop.permute.xlu0 %1067
  %v1071 = vsel %vm128, %v1066, 0
  %1073 = vmatprep.subr.mxu0 0.0
  %1074 = vmatpush1.msra.mxu0 %v1068
  %1075 = vmatprep.subr.mxu0 0.0
  %1076 = vmatpush1.msra.mxu0 0.0
  %1077 = vmatprep.subr.mxu0 0.0
  %1078 = vmatpush1.msra.mxu0 0.0
  %1079 = vmatprep.subr.mxu0 0.0
  %1080 = vmatpush1.msra.mxu0 0.0
  %1081 = vmatprep.subr.mxu0 0.0
  %1082 = vmatpush1.msra.mxu0 0.0
  %1083 = vmatprep.subr.mxu0 0.0
  %1084 = vmatpush1.msra.mxu0 0.0
  %1085 = vmatprep.subr.mxu0 0.0
  %1086 = vmatpush1.msra.mxu0 0.0
  %1087 = vmatprep.subr.mxu0 0.0
  %1088 = vmatpush1.msra.mxu0 0.0
  %1089 = vmatprep.subr.mxu0 0.0
  %1090 = vmatpush1.msra.mxu0 0.0
  %1091 = vmatprep.subr.mxu0 0.0
  %1092 = vmatpush1.msra.mxu0 0.0
  %1093 = vmatprep.subr.mxu0 0.0
  %1094 = vmatpush1.msra.mxu0 0.0
  %1095 = vmatprep.subr.mxu0 0.0
  %1096 = vmatpush1.msra.mxu0 0.0
  %1097 = vmatprep.subr.mxu0 0.0
  %1098 = vmatpush1.msra.mxu0 0.0
  %1099 = vmatprep.subr.mxu0 0.0
  %1100 = vmatpush1.msra.mxu0 0.0
  %1101 = vmatprep.subr.mxu0 0.0
  %1102 = vmatpush1.msra.mxu0 0.0
  %1103 = vmatprep.subr.mxu0 0.0
  %1104 = vmatpush1.msra.mxu0 0.0
  %1105 = vmatprep.subr.mxu0 0.0
  %1106 = vmatpush1.msra.mxu0 0.0
  %1107 = vmatprep.subr.mxu0 0.0
  %1108 = vmatpush1.msra.mxu0 0.0
  %1109 = vmatprep.subr.mxu0 0.0
  %1110 = vmatpush1.msra.mxu0 0.0
  %1111 = vmatprep.subr.mxu0 0.0
  %1112 = vmatpush1.msra.mxu0 0.0
  %1113 = vmatprep.subr.mxu0 0.0
  %1114 = vmatpush1.msra.mxu0 0.0
  %1115 = vmatprep.subr.mxu0 0.0
  %1116 = vmatpush1.msra.mxu0 0.0
  %1117 = vmatprep.subr.mxu0 0.0
  %1118 = vmatpush1.msra.mxu0 0.0
  %1119 = vmatprep.subr.mxu0 0.0
  %1120 = vmatpush1.msra.mxu0 0.0
  %1121 = vmatprep.subr.mxu0 0.0
  %1122 = vmatpush1.msra.mxu0 0.0
  %1123 = vmatprep.subr.mxu0 0.0
  %1124 = vmatpush1.msra.mxu0 0.0
  %1125 = vmatprep.subr.mxu0 0.0
  %1126 = vmatpush1.msra.mxu0 0.0
  %1127 = vmatprep.subr.mxu0 0.0
  %1128 = vmatpush1.msra.mxu0 0.0
  %1129 = vmatprep.subr.mxu0 0.0
  %1130 = vmatpush1.msra.mxu0 0.0
  %1131 = vmatprep.subr.mxu0 0.0
  %1132 = vmatpush1.msra.mxu0 0.0
  %1133 = vmatprep.subr.mxu0 0.0
  %1134 = vmatpush1.msra.mxu0 0.0
  %1135 = vmatprep.subr.mxu0 0.0
  %1136 = vmatpush1.msra.mxu0 0.0
  %1137 = vmatprep.mubr.f32.mxu0 0.0
  %1138 = vmatmul.mubr.f32.gmra.mrb[0].mxu0 %v1071
  %v1139 = vpop.f32.mrb[0].mxu0
  %v1140 = vadd.f32 0.0, %v1139
  %v1141 = vpop.f32.mrb[0].mxu0
  %1142 = vdwg.mxu0
  %1143 = vrot.lane.b32.xlu0 %v117, 112
  %v1144 = vpop.permute.xlu0 %1143
  %1145 = vrot.lane.b32.xlu0 %v117, 80
  %v1146 = vpop.permute.xlu0 %1145
  %v1147 = vsel %vm128, %v1144, 0
  %v1149 = vsel %vm128, %v1146, 0
  %1151 = vmatprep.subr.mxu0 0.0
  %1152 = vmatpush1.xpose.msra.mxu0 %v1149
  %1153 = vmatprep.subr.mxu0 0.0
  %1154 = vmatpush1.xpose.msra.mxu0 0.0
  %1155 = vmatprep.subr.mxu0 0.0
  %1156 = vmatpush1.xpose.msra.mxu0 0.0
  %1157 = vmatprep.subr.mxu0 0.0
  %1158 = vmatpush1.xpose.msra.mxu0 0.0
  %1159 = vmatprep.subr.mxu0 0.0
  %1160 = vmatpush1.xpose.msra.mxu0 0.0
  %1161 = vmatprep.subr.mxu0 0.0
  %1162 = vmatpush1.xpose.msra.mxu0 0.0
  %1163 = vmatprep.subr.mxu0 0.0
  %1164 = vmatpush1.xpose.msra.mxu0 0.0
  %1165 = vmatprep.subr.mxu0 0.0
  %1166 = vmatpush1.xpose.msra.mxu0 0.0
  %1167 = vmatprep.subr.mxu0 0.0
  %1168 = vmatpush1.xpose.msra.mxu0 0.0
  %1169 = vmatprep.subr.mxu0 0.0
  %1170 = vmatpush1.xpose.msra.mxu0 0.0
  %1171 = vmatprep.subr.mxu0 0.0
  %1172 = vmatpush1.xpose.msra.mxu0 0.0
  %1173 = vmatprep.subr.mxu0 0.0
  %1174 = vmatpush1.xpose.msra.mxu0 0.0
  %1175 = vmatprep.subr.mxu0 0.0
  %1176 = vmatpush1.xpose.msra.mxu0 0.0
  %1177 = vmatprep.subr.mxu0 0.0
  %1178 = vmatpush1.xpose.msra.mxu0 0.0
  %1179 = vmatprep.subr.mxu0 0.0
  %1180 = vmatpush1.xpose.msra.mxu0 0.0
  %1181 = vmatprep.subr.mxu0 0.0
  %1182 = vmatpush1.xpose.msra.mxu0 0.0
  %1183 = vmatprep.subr.mxu0 0.0
  %1184 = vmatpush1.xpose.msra.mxu0 0.0
  %1185 = vmatprep.subr.mxu0 0.0
  %1186 = vmatpush1.xpose.msra.mxu0 0.0
  %1187 = vmatprep.subr.mxu0 0.0
  %1188 = vmatpush1.xpose.msra.mxu0 0.0
  %1189 = vmatprep.subr.mxu0 0.0
  %1190 = vmatpush1.xpose.msra.mxu0 0.0
  %1191 = vmatprep.subr.mxu0 0.0
  %1192 = vmatpush1.xpose.msra.mxu0 0.0
  %1193 = vmatprep.subr.mxu0 0.0
  %1194 = vmatpush1.xpose.msra.mxu0 0.0
  %1195 = vmatprep.subr.mxu0 0.0
  %1196 = vmatpush1.xpose.msra.mxu0 0.0
  %1197 = vmatprep.subr.mxu0 0.0
  %1198 = vmatpush1.xpose.msra.mxu0 0.0
  %1199 = vmatprep.subr.mxu0 0.0
  %1200 = vmatpush1.xpose.msra.mxu0 0.0
  %1201 = vmatprep.subr.mxu0 0.0
  %1202 = vmatpush1.xpose.msra.mxu0 0.0
  %1203 = vmatprep.subr.mxu0 0.0
  %1204 = vmatpush1.xpose.msra.mxu0 0.0
  %1205 = vmatprep.subr.mxu0 0.0
  %1206 = vmatpush1.xpose.msra.mxu0 0.0
  %1207 = vmatprep.subr.mxu0 0.0
  %1208 = vmatpush1.xpose.msra.mxu0 0.0
  %1209 = vmatprep.subr.mxu0 0.0
  %1210 = vmatpush1.xpose.msra.mxu0 0.0
  %1211 = vmatprep.subr.mxu0 0.0
  %1212 = vmatpush1.xpose.msra.mxu0 0.0
  %1213 = vmatprep.subr.mxu0 0.0
  %1214 = vmatpush1.xpose.msra.mxu0 0.0
  %1215 = vmatprep.mubr.f32.mxu0 0.0
  %1216 = vmatmul.mubr.f32.gmra.mrb[0].mxu0 %v1147
  %v1217 = vpop.f32.mrb[0].mxu0
  %v1218 = vadd.f32 0.0, %v1217
  %v1219 = vpop.f32.mrb[0].mxu0
  %1220 = vdwg.mxu0
  %v1221 = vmul.f32 %v1218, 0.35355338
  %v1222 = vsel %vm124, %v1221, -inf
  %v1223 = vsel %vm128, %v1222, -inf
  %1224 = vmax.xlane.f32.xlu0 %v1223
  %v1225 = vpop.xlane.xlu0 %1224
  %v1226 = vsub.f32 %v1222, %v1225
  %v1227 = vmul.f32 %v1226, 1.442695
  %v1228 = vpow.pop %v1227
  %v1229 = vsel %vm128, %v1228, 0.0
  %1230 = vadd.xlane.f32.xlu0 %v1229
  %v1231 = vpop.xlane.xlu0 %1230
  %v1232 = vrcp.pop %v1231
  %v1233 = vmul.f32 %v1228, %v1232
  %1234 = vrot.lane.b32.xlu0 %v117, 48
  %v1235 = vpop.permute.xlu0 %1234
  %v1238 = vsel %vm128, %v1233, 0
  %1240 = vmatprep.subr.mxu0 0.0
  %1241 = vmatpush1.msra.mxu0 %v1235
  %1242 = vmatprep.subr.mxu0 0.0
  %1243 = vmatpush1.msra.mxu0 0.0
  %1244 = vmatprep.subr.mxu0 0.0
  %1245 = vmatpush1.msra.mxu0 0.0
  %1246 = vmatprep.subr.mxu0 0.0
  %1247 = vmatpush1.msra.mxu0 0.0
  %1248 = vmatprep.subr.mxu0 0.0
  %1249 = vmatpush1.msra.mxu0 0.0
  %1250 = vmatprep.subr.mxu0 0.0
  %1251 = vmatpush1.msra.mxu0 0.0
  %1252 = vmatprep.subr.mxu0 0.0
  %1253 = vmatpush1.msra.mxu0 0.0
  %1254 = vmatprep.subr.mxu0 0.0
  %1255 = vmatpush1.msra.mxu0 0.0
  %1256 = vmatprep.subr.mxu0 0.0
  %1257 = vmatpush1.msra.mxu0 0.0
  %1258 = vmatprep.subr.mxu0 0.0
  %1259 = vmatpush1.msra.mxu0 0.0
  %1260 = vmatprep.subr.mxu0 0.0
  %1261 = vmatpush1.msra.mxu0 0.0
  %1262 = vmatprep.subr.mxu0 0.0
  %1263 = vmatpush1.msra.mxu0 0.0
  %1264 = vmatprep.subr.mxu0 0.0
  %1265 = vmatpush1.msra.mxu0 0.0
  %1266 = vmatprep.subr.mxu0 0.0
  %1267 = vmatpush1.msra.mxu0 0.0
  %1268 = vmatprep.subr.mxu0 0.0
  %1269 = vmatpush1.msra.mxu0 0.0
  %1270 = vmatprep.subr.mxu0 0.0
  %1271 = vmatpush1.msra.mxu0 0.0
  %1272 = vmatprep.subr.mxu0 0.0
  %1273 = vmatpush1.msra.mxu0 0.0
  %1274 = vmatprep.subr.mxu0 0.0
  %1275 = vmatpush1.msra.mxu0 0.0
  %1276 = vmatprep.subr.mxu0 0.0
  %1277 = vmatpush1.msra.mxu0 0.0
  %1278 = vmatprep.subr.mxu0 0.0
  %1279 = vmatpush1.msra.mxu0 0.0
  %1280 = vmatprep.subr.mxu0 0.0
  %1281 = vmatpush1.msra.mxu0 0.0
  %1282 = vmatprep.subr.mxu0 0.0
  %1283 = vmatpush1.msra.mxu0 0.0
  %1284 = vmatprep.subr.mxu0 0.0
  %1285 = vmatpush1.msra.mxu0 0.0
  %1286 = vmatprep.subr.mxu0 0.0
  %1287 = vmatpush1.msra.mxu0 0.0
  %1288 = vmatprep.subr.mxu0 0.0
  %1289 = vmatpush1.msra.mxu0 0.0
  %1290 = vmatprep.subr.mxu0 0.0
  %1291 = vmatpush1.msra.mxu0 0.0
  %1292 = vmatprep.subr.mxu0 0.0
  %1293 = vmatpush1.msra.mxu0 0.0
  %1294 = vmatprep.subr.mxu0 0.0
  %1295 = vmatpush1.msra.mxu0 0.0
  %1296 = vmatprep.subr.mxu0 0.0
  %1297 = vmatpush1.msra.mxu0 0.0
  %1298 = vmatprep.subr.mxu0 0.0
  %1299 = vmatpush1.msra.mxu0 0.0
  %1300 = vmatprep.subr.mxu0 0.0
  %1301 = vmatpush1.msra.mxu0 0.0
  %1302 = vmatprep.subr.mxu0 0.0
  %1303 = vmatpush1.msra.mxu0 0.0
  %1304 = vmatprep.mubr.f32.mxu0 0.0
  %1305 = vmatmul.mubr.f32.gmra.mrb[0].mxu0 %v1238
  %v1306 = vpop.f32.mrb[0].mxu0
  %v1307 = vadd.f32 0.0, %v1306
  %v1308 = vpop.f32.mrb[0].mxu0
  %1309 = vdwg.mxu0
  %1310 = vrot.lane.b32.xlu0 %v117, 104
  %v1311 = vpop.permute.xlu0 %1310
  %1312 = vrot.lane.b32.xlu0 %v117, 72
  %v1313 = vpop.permute.xlu0 %1312
  %v1314 = vsel %vm128, %v1311, 0
  %v1316 = vsel %vm128, %v1313, 0
  %1318 = vmatprep.subr.mxu0 0.0
  %1319 = vmatpush1.xpose.msra.mxu0 %v1316
  %1320 = vmatprep.subr.mxu0 0.0
  %1321 = vmatpush1.xpose.msra.mxu0 0.0
  %1322 = vmatprep.subr.mxu0 0.0
  %1323 = vmatpush1.xpose.msra.mxu0 0.0
  %1324 = vmatprep.subr.mxu0 0.0
  %1325 = vmatpush1.xpose.msra.mxu0 0.0
  %1326 = vmatprep.subr.mxu0 0.0
  %1327 = vmatpush1.xpose.msra.mxu0 0.0
  %1328 = vmatprep.subr.mxu0 0.0
  %1329 = vmatpush1.xpose.msra.mxu0 0.0
  %1330 = vmatprep.subr.mxu0 0.0
  %1331 = vmatpush1.xpose.msra.mxu0 0.0
  %1332 = vmatprep.subr.mxu0 0.0
  %1333 = vmatpush1.xpose.msra.mxu0 0.0
  %1334 = vmatprep.subr.mxu0 0.0
  %1335 = vmatpush1.xpose.msra.mxu0 0.0
  %1336 = vmatprep.subr.mxu0 0.0
  %1337 = vmatpush1.xpose.msra.mxu0 0.0
  %1338 = vmatprep.subr.mxu0 0.0
  %1339 = vmatpush1.xpose.msra.mxu0 0.0
  %1340 = vmatprep.subr.mxu0 0.0
  %1341 = vmatpush1.xpose.msra.mxu0 0.0
  %1342 = vmatprep.subr.mxu0 0.0
  %1343 = vmatpush1.xpose.msra.mxu0 0.0
  %1344 = vmatprep.subr.mxu0 0.0
  %1345 = vmatpush1.xpose.msra.mxu0 0.0
  %1346 = vmatprep.subr.mxu0 0.0
  %1347 = vmatpush1.xpose.msra.mxu0 0.0
  %1348 = vmatprep.subr.mxu0 0.0
  %1349 = vmatpush1.xpose.msra.mxu0 0.0
  %1350 = vmatprep.subr.mxu0 0.0
  %1351 = vmatpush1.xpose.msra.mxu0 0.0
  %1352 = vmatprep.subr.mxu0 0.0
  %1353 = vmatpush1.xpose.msra.mxu0 0.0
  %1354 = vmatprep.subr.mxu0 0.0
  %1355 = vmatpush1.xpose.msra.mxu0 0.0
  %1356 = vmatprep.subr.mxu0 0.0
  %1357 = vmatpush1.xpose.msra.mxu0 0.0
  %1358 = vmatprep.subr.mxu0 0.0
  %1359 = vmatpush1.xpose.msra.mxu0 0.0
  %1360 = vmatprep.subr.mxu0 0.0
  %1361 = vmatpush1.xpose.msra.mxu0 0.0
  %1362 = vmatprep.subr.mxu0 0.0
  %1363 = vmatpush1.xpose.msra.mxu0 0.0
  %1364 = vmatprep.subr.mxu0 0.0
  %1365 = vmatpush1.xpose.msra.mxu0 0.0
  %1366 = vmatprep.subr.mxu0 0.0
  %1367 = vmatpush1.xpose.msra.mxu0 0.0
  %1368 = vmatprep.subr.mxu0 0.0
  %1369 = vmatpush1.xpose.msra.mxu0 0.0
  %1370 = vmatprep.subr.mxu0 0.0
  %1371 = vmatpush1.xpose.msra.mxu0 0.0
  %1372 = vmatprep.subr.mxu0 0.0
  %1373 = vmatpush1.xpose.msra.mxu0 0.0
  %1374 = vmatprep.subr.mxu0 0.0
  %1375 = vmatpush1.xpose.msra.mxu0 0.0
  %1376 = vmatprep.subr.mxu0 0.0
  %1377 = vmatpush1.xpose.msra.mxu0 0.0
  %1378 = vmatprep.subr.mxu0 0.0
  %1379 = vmatpush1.xpose.msra.mxu0 0.0
  %1380 = vmatprep.subr.mxu0 0.0
  %1381 = vmatpush1.xpose.msra.mxu0 0.0
  %1382 = vmatprep.mubr.f32.mxu0 0.0
  %1383 = vmatmul.mubr.f32.gmra.mrb[0].mxu0 %v1314
  %v1384 = vpop.f32.mrb[0].mxu0
  %v1385 = vadd.f32 0.0, %v1384
  %v1386 = vpop.f32.mrb[0].mxu0
  %1387 = vdwg.mxu0
  %v1388 = vmul.f32 %v1385, 0.35355338
  %v1389 = vsel %vm124, %v1388, -inf
  %v1390 = vsel %vm128, %v1389, -inf
  %1391 = vmax.xlane.f32.xlu0 %v1390
  %v1392 = vpop.xlane.xlu0 %1391
  %v1393 = vsub.f32 %v1389, %v1392
  %v1394 = vmul.f32 %v1393, 1.442695
  %v1395 = vpow.pop %v1394
  %v1396 = vsel %vm128, %v1395, 0.0
  %1397 = vadd.xlane.f32.xlu0 %v1396
  %v1398 = vpop.xlane.xlu0 %1397
  %v1399 = vrcp.pop %v1398
  %v1400 = vmul.f32 %v1395, %v1399
  %1401 = vrot.lane.b32.xlu0 %v117, 40
  %v1402 = vpop.permute.xlu0 %1401
  %v1405 = vsel %vm128, %v1400, 0
  %1407 = vmatprep.subr.mxu0 0.0
  %1408 = vmatpush1.msra.mxu0 %v1402
  %1409 = vmatprep.subr.mxu0 0.0
  %1410 = vmatpush1.msra.mxu0 0.0
  %1411 = vmatprep.subr.mxu0 0.0
  %1412 = vmatpush1.msra.mxu0 0.0
  %1413 = vmatprep.subr.mxu0 0.0
  %1414 = vmatpush1.msra.mxu0 0.0
  %1415 = vmatprep.subr.mxu0 0.0
  %1416 = vmatpush1.msra.mxu0 0.0
  %1417 = vmatprep.subr.mxu0 0.0
  %1418 = vmatpush1.msra.mxu0 0.0
  %1419 = vmatprep.subr.mxu0 0.0
  %1420 = vmatpush1.msra.mxu0 0.0
  %1421 = vmatprep.subr.mxu0 0.0
  %1422 = vmatpush1.msra.mxu0 0.0
  %1423 = vmatprep.subr.mxu0 0.0
  %1424 = vmatpush1.msra.mxu0 0.0
  %1425 = vmatprep.subr.mxu0 0.0
  %1426 = vmatpush1.msra.mxu0 0.0
  %1427 = vmatprep.subr.mxu0 0.0
  %1428 = vmatpush1.msra.mxu0 0.0
  %1429 = vmatprep.subr.mxu0 0.0
  %1430 = vmatpush1.msra.mxu0 0.0
  %1431 = vmatprep.subr.mxu0 0.0
  %1432 = vmatpush1.msra.mxu0 0.0
  %1433 = vmatprep.subr.mxu0 0.0
  %1434 = vmatpush1.msra.mxu0 0.0
  %1435 = vmatprep.subr.mxu0 0.0
  %1436 = vmatpush1.msra.mxu0 0.0
  %1437 = vmatprep.subr.mxu0 0.0
  %1438 = vmatpush1.msra.mxu0 0.0
  %1439 = vmatprep.subr.mxu0 0.0
  %1440 = vmatpush1.msra.mxu0 0.0
  %1441 = vmatprep.subr.mxu0 0.0
  %1442 = vmatpush1.msra.mxu0 0.0
  %1443 = vmatprep.subr.mxu0 0.0
  %1444 = vmatpush1.msra.mxu0 0.0
  %1445 = vmatprep.subr.mxu0 0.0
  %1446 = vmatpush1.msra.mxu0 0.0
  %1447 = vmatprep.subr.mxu0 0.0
  %1448 = vmatpush1.msra.mxu0 0.0
  %1449 = vmatprep.subr.mxu0 0.0
  %1450 = vmatpush1.msra.mxu0 0.0
  %1451 = vmatprep.subr.mxu0 0.0
  %1452 = vmatpush1.msra.mxu0 0.0
  %1453 = vmatprep.subr.mxu0 0.0
  %1454 = vmatpush1.msra.mxu0 0.0
  %1455 = vmatprep.subr.mxu0 0.0
  %1456 = vmatpush1.msra.mxu0 0.0
  %1457 = vmatprep.subr.mxu0 0.0
  %1458 = vmatpush1.msra.mxu0 0.0
  %1459 = vmatprep.subr.mxu0 0.0
  %1460 = vmatpush1.msra.mxu0 0.0
  %1461 = vmatprep.subr.mxu0 0.0
  %1462 = vmatpush1.msra.mxu0 0.0
  %1463 = vmatprep.subr.mxu0 0.0
  %1464 = vmatpush1.msra.mxu0 0.0
  %1465 = vmatprep.subr.mxu0 0.0
  %1466 = vmatpush1.msra.mxu0 0.0
  %1467 = vmatprep.subr.mxu0 0.0
  %1468 = vmatpush1.msra.mxu0 0.0
  %1469 = vmatprep.subr.mxu0 0.0
  %1470 = vmatpush1.msra.mxu0 0.0
  %1471 = vmatprep.mubr.f32.mxu0 0.0
  %1472 = vmatmul.mubr.f32.gmra.mrb[0].mxu0 %v1405
  %v1473 = vpop.f32.mrb[0].mxu0
  %v1474 = vadd.f32 0.0, %v1473
  %v1475 = vpop.f32.mrb[0].mxu0
  %1476 = vdwg.mxu0
  %1478 = vrot.lane.b32.xlu0 %v1140, 8
  %v1479 = vpop.permute.xlu0 %1478
  %1482 = vrot.lane.b32.xlu0 %v1307, 16
  %v1483 = vpop.permute.xlu0 %1482
  %1486 = vrot.lane.b32.xlu0 %v1474, 24
  %v1487 = vpop.permute.xlu0 %1486
  %v1489 = vsel %vm128, %v973, %v1479
  %v1490 = vsel %vm806, %v1489, %v1483
  %v1491 = vsel %vm808, %v1490, %v1487
  %v1493 = vlaneseq
  %v1494 = vshrl.u32 %v1493, 7
  %v1495 = vsub.s32 0, %v1494
  %v1496 = vrot.slane %v31, %v1495
  %v1499 = vsel %vm38, %v809, 0
  %v1502 = vsel %vm38, %v1491, 0
  %1504 = vmatprep.subr.mxu0 0.0
  %1505 = vmatpush1.msra.mxu0 %v27
  %1506 = vmatprep.subr.mxu0 0.0
  %1507 = vmatpush1.msra.mxu0 %v28
  %1508 = vmatprep.subr.mxu0 0.0
  %1509 = vmatpush1.msra.mxu0 %v29
  %1510 = vmatprep.subr.mxu0 0.0
  %1511 = vmatpush1.msra.mxu0 %v30
  %1512 = vmatprep.subr.mxu0 0.0
  %1513 = vmatpush1.msra.mxu0 0.0
  %1514 = vmatprep.subr.mxu0 0.0
  %1515 = vmatpush1.msra.mxu0 0.0
  %1516 = vmatprep.subr.mxu0 0.0
  %1517 = vmatpush1.msra.mxu0 0.0
  %1518 = vmatprep.subr.mxu0 0.0
  %1519 = vmatpush1.msra.mxu0 0.0
  %1520 = vmatprep.subr.mxu0 0.0
  %1521 = vmatpush1.msra.mxu0 0.0
  %1522 = vmatprep.subr.mxu0 0.0
  %1523 = vmatpush1.msra.mxu0 0.0
  %1524 = vmatprep.subr.mxu0 0.0
  %1525 = vmatpush1.msra.mxu0 0.0
  %1526 = vmatprep.subr.mxu0 0.0
  %1527 = vmatpush1.msra.mxu0 0.0
  %1528 = vmatprep.subr.mxu0 0.0
  %1529 = vmatpush1.msra.mxu0 0.0
  %1530 = vmatprep.subr.mxu0 0.0
  %1531 = vmatpush1.msra.mxu0 0.0
  %1532 = vmatprep.subr.mxu0 0.0
  %1533 = vmatpush1.msra.mxu0 0.0
  %1534 = vmatprep.subr.mxu0 0.0
  %1535 = vmatpush1.msra.mxu0 0.0
  %1536 = vmatprep.subr.mxu0 0.0
  %1537 = vmatpush1.msra.mxu0 0.0
  %1538 = vmatprep.subr.mxu0 0.0
  %1539 = vmatpush1.msra.mxu0 0.0
  %1540 = vmatprep.subr.mxu0 0.0
  %1541 = vmatpush1.msra.mxu0 0.0
  %1542 = vmatprep.subr.mxu0 0.0
  %1543 = vmatpush1.msra.mxu0 0.0
  %1544 = vmatprep.subr.mxu0 0.0
  %1545 = vmatpush1.msra.mxu0 0.0
  %1546 = vmatprep.subr.mxu0 0.0
  %1547 = vmatpush1.msra.mxu0 0.0
  %1548 = vmatprep.subr.mxu0 0.0
  %1549 = vmatpush1.msra.mxu0 0.0
  %1550 = vmatprep.subr.mxu0 0.0
  %1551 = vmatpush1.msra.mxu0 0.0
  %1552 = vmatprep.subr.mxu0 0.0
  %1553 = vmatpush1.msra.mxu0 0.0
  %1554 = vmatprep.subr.mxu0 0.0
  %1555 = vmatpush1.msra.mxu0 0.0
  %1556 = vmatprep.subr.mxu0 0.0
  %1557 = vmatpush1.msra.mxu0 0.0
  %1558 = vmatprep.subr.mxu0 0.0
  %1559 = vmatpush1.msra.mxu0 0.0
  %1560 = vmatprep.subr.mxu0 0.0
  %1561 = vmatpush1.msra.mxu0 0.0
  %1562 = vmatprep.subr.mxu0 0.0
  %1563 = vmatpush1.msra.mxu0 0.0
  %1564 = vmatprep.subr.mxu0 0.0
  %1565 = vmatpush1.msra.mxu0 0.0
  %1566 = vmatprep.subr.mxu0 0.0
  %1567 = vmatpush1.msra.mxu0 0.0
  %1568 = vmatprep.mubr.f32.mxu0 0.0
  %1569 = vmatmul.mubr.f32.gmra.mrb[0].mxu0 %v1499
  %v1570 = vpop.f32.mrb[0].mxu0
  %v1571 = vadd.f32 %v1496, %v1570
  %v1572 = vpop.f32.mrb[0].mxu0
  %1573 = vmatprep.mubr.f32.mxu0 0.0
  %1574 = vmatmul.mubr.f32.gmra.mrb[0].mxu0 %v1502
  %v1575 = vpop.f32.mrb[0].mxu0
  %v1576 = vadd.f32 %v1496, %v1575
  %v1577 = vpop.f32.mrb[0].mxu0
  %1578 = vdwg.mxu0
  %1581 = vrot.lane.b32.xlu0 %v1571, 32
  %v1582 = vpop.permute.xlu0 %1581
  %1583 = vrot.lane.b32.xlu0 %v1576, 32
  %v1584 = vpop.permute.xlu0 %1583
  %1587 = vrot.lane.b32.xlu0 %v1571, 64
  %v1588 = vpop.permute.xlu0 %1587
  %1589 = vrot.lane.b32.xlu0 %v1576, 64
  %v1590 = vpop.permute.xlu0 %1589
  %v1593 = vsel %vm38, %v1571, %v1582
  %v1594 = vsel %vm38, %v1576, %v1584
  %vm1595 = vcmask 523264
  %v1596 = vsel %vm1595, %v1593, %v1588
  %v1597 = vsel %vm1595, %v1594, %v1590
  %vm1598 = vcmask 785408
  %1599 = vst.msk [vmem:[%s5] sm:$0xff] %vm1598, %v1596
  %1600 = vst.msk [vmem:[%s5 + $0x8] sm:$0xff] %vm1598, %v1597
  // Predicated region
  $region22: #{causal_self_attention.1} parent=0 // pred_check
    _
  $region23: #{causal_self_attention.1} parent=0 // pred_check_branch
    %1602 = sbr.rel (0) target = $region25
  $region24: #{causal_self_attention.1} parent=0 // pred_region
    _
  $region25: #{causal_self_attention.1} parent=0 // pred_fallthru
    _
  // Predicated region
  $region26: #{causal_self_attention.1} parent=0 // pred_check
    _
  $region27: #{causal_self_attention.1} parent=0 // pred_check_branch
    %1604 = sbr.rel (0) target = $region29
  $region28: #{causal_self_attention.1} parent=0 // pred_region
    _
  $region29: #{causal_self_attention.1} parent=0 // pred_fallthru
    _

</llo_original>
